<compile_context>
chip_gen: v7x
topology: tpu7x:2x2x1
jax: 0.10.0
libtpu: 0.0.40
codegen_flags: <defaults>
</compile_context>

<pallas_src>
import functools
import math

import numpy as np
import jax
import jax.numpy as jnp
from jax import lax
from jax.experimental import pallas as pl
from jax.experimental.pallas import tpu as pltpu


def _round_up(x, m):
    return ((x + m - 1) // m) * m


# ---------------------------------------------------------------------------
# Fused Pallas kernel: one block of B images per grid step
# ---------------------------------------------------------------------------

def _dis_block_kernel(B, S, L, Wp,
                      x_ref, mask_ref, w1_ref, w2sc_ref, b1_ref, bo_ref,
                      pool_ref, o_ref, rhs1_ref, a1pad_ref, rhs2_ref):
    """relu -> c1(3x3) -> relu -> c2(3x3)+shortcut -> unpad/pool, all in VMEM."""
    cin = x_ref.shape[0]
    hidden = w1_ref.shape[0]
    LT = (B - 1) * S + L                    # lanes carrying real conv outputs
    offs = tuple(kh * Wp + kw for kh in range(3) for kw in range(3))
    ctr = Wp + 1                            # un-shifted interior / centre tap

    # ---- stage 1: leading ReLU + stacked 9-tap RHS -> one conv1 GEMM -------
    xr = jnp.maximum(x_ref[...], 0)                      # (cin, B*S) bf16
    for t, off in enumerate(offs):
        rhs1_ref[t * cin:(t + 1) * cin, :] = xr[:, off:off + LT]
    h1 = jnp.dot(w1_ref[...], rhs1_ref[...],
                 preferred_element_type=jnp.float32)     # (hidden, LT) f32

    # bias + ReLU; mask zeroes the per-row wrap columns and per-image tails
    a1 = (jnp.maximum(h1 + b1_ref[...], 0.0) * mask_ref[...]).astype(jnp.bfloat16)

    # ---- stage 2: "same"-padded view of a1 via a persistent slab -----------
    # Only the thin borders are re-zeroed each step (interior is fully
    # overwritten), so there is no full-slab memset and this stays correct
    # even if the parallel grid is split across TensorCores.
    a1pad_ref[:, 0:ctr] = jnp.zeros((hidden, ctr), jnp.bfloat16)
    a1pad_ref[:, ctr + LT:B * S] = jnp.zeros((hidden, B * S - LT - ctr),
                                             jnp.bfloat16)
    a1pad_ref[:, ctr:ctr + LT] = a1

    # stacked 9-tap RHS for conv2, with the raw-x shortcut rows appended so
    # conv2 + 1x1 shortcut come out of ONE matmul (K = 9*hidden + cin).
    for t, off in enumerate(offs):
        rhs2_ref[t * hidden:(t + 1) * hidden, :] = a1pad_ref[:, off:off + LT]
    rhs2_ref[9 * hidden:9 * hidden + cin, :] = x_ref[:, ctr:ctr + LT]
    h2s = jnp.dot(w2sc_ref[...], rhs2_ref[...],
                  preferred_element_type=jnp.float32)    # (cout, LT) = h2 + sc

    # ---- stage 3: fused un-pad (+ 2x2 avg-pool) + biases, lane-dense store --
    # pool columns sum to 1, so (b2 + bsc) is added after the selection GEMM.
    pieces = [jnp.dot(h2s[:, b * S:b * S + L], pool_ref[...],
                      preferred_element_type=jnp.float32) for b in range(B)]
    y = pieces[0] if B == 1 else jnp.concatenate(pieces, axis=1)   # (cout, B*Lo)
    o_ref[...] = (y + bo_ref[...]).astype(o_ref.dtype)


# ---------------------------------------------------------------------------
# Wrapper: layout prep (cheap XLA / numpy) + pallas_call
# ---------------------------------------------------------------------------

def dis_block_forward(x_nchw, params, downsample, batch_block=None):
    N, cin, H, W = x_nchw.shape
    hidden = params["w1"].shape[0]
    cout = params["w2"].shape[0]
    learnable_sc = (cin != cout) or downsample

    Hp, Wp = H + 2, W + 2
    L = H * Wp                       # flattened (H, Wp) "valid rows" grid
    Lp = Hp * Wp                     # fully padded image
    S = _round_up(Lp + 2, 128)       # per-image lane slab (headroom for shifts)

    if batch_block is None:
        B = min(N, 8)
        if N >= 4:                   # keep >= 2 grid steps for v7x's two cores
            B = min(B, pl.cdiv(N, 2))
    else:
        B = batch_block
    Nb = pl.cdiv(N, B) * B
    LT = (B - 1) * S + L

    Ho, Wo = (H // 2, W // 2) if downsample else (H, W)
    Lo = Ho * Wo

    # ---- input: NCHW -> channel-major (cin, Nb*S) bf16 lane slabs ----------
    xpad = jnp.pad(x_nchw, ((0, Nb - N), (0, 0), (1, 1), (1, 1)))
    x_lanes = jnp.transpose(xpad.reshape(Nb, cin, Lp), (1, 0, 2))
    x_lanes = jnp.pad(x_lanes, ((0, 0), (0, 0), (0, S - Lp)))
    x_lanes = x_lanes.reshape(cin, Nb * S).astype(jnp.bfloat16)

    # ---- weights: tap-major flattened GEMM operands, bf16 ------------------
    w1f = jnp.transpose(params["w1"], (0, 2, 3, 1)).reshape(hidden, 9 * cin)
    w2f = jnp.transpose(params["w2"], (0, 2, 3, 1)).reshape(cout, 9 * hidden)
    if learnable_sc:
        wsc = params["wsc"][:, :, 0, 0]
        bsc = params["bsc"]
    else:
        wsc = jnp.eye(cout, dtype=jnp.float32)           # identity shortcut
        bsc = jnp.zeros((cout,), jnp.float32)
    w1f = w1f.astype(jnp.bfloat16)
    w2scf = jnp.concatenate([w2f, wsc], axis=1).astype(jnp.bfloat16)
    b1 = params["b1"].astype(jnp.float32).reshape(hidden, 1)
    bo = (params["b2"] + bsc).astype(jnp.float32).reshape(cout, 1)

    # ---- host-built constants: valid-lane mask + unpad/avg-pool matrix -----
    p = np.arange(LT)
    j = p % S
    valid_lane = (j < L) & ((j % Wp) < W)
    mask = jnp.asarray(valid_lane.astype(np.float32)[None, :])        # (1, LT)

    jj = np.arange(L)
    hh, ww = jj // Wp, jj % Wp
    vv = ww < W
    if downsample:
        mm = (hh // 2) * Wo + np.minimum(ww, W - 1) // 2
        scale = 0.25
    else:
        mm = hh * Wo + np.minimum(ww, W - 1)
        scale = 1.0
    pool_np = np.zeros((L, Lo), np.float32)
    pool_np[jj[vv], mm[vv]] = scale
    pool = jnp.asarray(pool_np)

    out = pl.pallas_call(
        functools.partial(_dis_block_kernel, B, S, L, Wp),
        out_shape=jax.ShapeDtypeStruct((cout, Nb * Lo), jnp.float32),
        grid=(Nb // B,),
        in_specs=[
            pl.BlockSpec((cin, B * S), lambda n: (0, n)),
            pl.BlockSpec((1, LT), lambda n: (0, 0)),
            pl.BlockSpec((hidden, 9 * cin), lambda n: (0, 0)),
            pl.BlockSpec((cout, 9 * hidden + cin), lambda n: (0, 0)),
            pl.BlockSpec((hidden, 1), lambda n: (0, 0)),
            pl.BlockSpec((cout, 1), lambda n: (0, 0)),
            pl.BlockSpec((L, Lo), lambda n: (0, 0)),
        ],
        out_specs=pl.BlockSpec((cout, B * Lo), lambda n: (0, n)),
        scratch_shapes=[
            pltpu.VMEM((9 * cin, LT), jnp.bfloat16),           # conv1 stacked RHS
            pltpu.VMEM((hidden, B * S), jnp.bfloat16),         # padded a1 slab
            pltpu.VMEM((9 * hidden + cin, LT), jnp.bfloat16),  # conv2+sc stacked RHS
        ],
        compiler_params=pltpu.CompilerParams(
            dimension_semantics=("parallel",)),
    )(x_lanes, mask, w1f, w2scf, b1, bo, pool)

    out = out.reshape(cout, Nb, Lo).transpose(1, 0, 2)[:N]
    return out.reshape(N, cout, Ho, Wo)


# ---------------------------------------------------------------------------
# Pure-JAX reference + deterministic parameter setup (matches DisBlock init)
# ---------------------------------------------------------------------------

def _conv2d_ref(x, w, b, pad):
    y = lax.conv_general_dilated(
        x, w, window_strides=(1, 1), padding=[(pad, pad), (pad, pad)],
        dimension_numbers=("NCHW", "OIHW", "NCHW"),
        precision=lax.Precision.HIGHEST)
    return y + b.reshape(1, -1, 1, 1)


def _avg_pool2_nchw(x):
    N, C, H, W = x.shape
    return x.reshape(N, C, H // 2, 2, W // 2, 2).mean(axis=(3, 5))


def dis_block_reference(x, params, downsample):
    cin = x.shape[1]
    cout = params["w2"].shape[0]
    h = jax.nn.relu(x)
    h = _conv2d_ref(h, params["w1"], params["b1"], 1)
    h = jax.nn.relu(h)
    h = _conv2d_ref(h, params["w2"], params["b2"], 1)
    if downsample:
        h = _avg_pool2_nchw(h)
    if (cin != cout) or downsample:
        sc = _conv2d_ref(x, params["wsc"], params["bsc"], 0)
        if downsample:
            sc = _avg_pool2_nchw(sc)
    else:
        sc = x
    return h + sc


def xavier_uniform(key, shape, gain):
    cout, cin, kh, kw = shape
    fan_in, fan_out = cin * kh * kw, cout * kh * kw
    bound = gain * math.sqrt(6.0 / (fan_in + fan_out))
    return jax.random.uniform(key, shape, jnp.float32, -bound, bound)


def spectral_normalize(w, key, n_iter=1, eps=1e-12):
    """W / sigma(W): one power iteration like torch.nn.utils.spectral_norm."""
    cout = w.shape[0]
    wm = w.reshape(cout, -1)
    u = jax.random.normal(key, (cout,), jnp.float32)
    u = u / (jnp.linalg.norm(u) + eps)
    for _ in range(n_iter):
        v = wm.T @ u
        v = v / (jnp.linalg.norm(v) + eps)
        u = wm @ v
        u = u / (jnp.linalg.norm(u) + eps)
    sigma = u @ (wm @ v)
    return w / sigma


# ---------------------------------------------------------------------------

if __name__ == "__main__":
    key = jax.random.PRNGKey(0)
    ks = jax.random.split(key, 8)
    fwd = jax.jit(dis_block_forward, static_argnames=("downsample", "batch_block"))
    TOL = 2e-2   # bf16 single-pass MXU numerics vs f32-HIGHEST reference

    # -- case 1: in=4 -> out=8, downsample=True (learnable shortcut + pool) --
    cin, cout, hidden = 4, 8, 4          # hidden_channels=None -> in_channels
    N, H, W = 2, 16, 16
    w1 = spectral_normalize(xavier_uniform(ks[0], (hidden, cin, 3, 3), math.sqrt(2.0)), ks[3])
    w2 = spectral_normalize(xavier_uniform(ks[1], (cout, hidden, 3, 3), math.sqrt(2.0)), ks[4])
    wsc = spectral_normalize(xavier_uniform(ks[2], (cout, cin, 1, 1), 1.0), ks[5])
    params = dict(w1=w1, b1=jnp.zeros((hidden,), jnp.float32),
                  w2=w2, b2=jnp.zeros((cout,), jnp.float32),
                  wsc=wsc, bsc=jnp.zeros((cout,), jnp.float32))
    x = jax.random.normal(ks[6], (N, cin, H, W), jnp.float32)

    out = jax.block_until_ready(fwd(x, params, downsample=True))
    ref = dis_block_reference(x, params, True)
    assert out.shape == ref.shape == (N, cout, H // 2, W // 2)
    assert bool(jnp.allclose(out, ref, atol=TOL, rtol=TOL)), "case1 mismatch"

    # -- case 2: in=out=8, downsample=False (identity shortcut) --------------
    c2 = 8
    w1b = spectral_normalize(xavier_uniform(ks[7], (c2, c2, 3, 3), math.sqrt(2.0)), ks[3])
    w2b = spectral_normalize(xavier_uniform(ks[0], (c2, c2, 3, 3), math.sqrt(2.0)), ks[4])
    params2 = dict(w1=w1b, b1=jnp.zeros((c2,), jnp.float32),
                   w2=w2b, b2=jnp.zeros((c2,), jnp.float32))
    x2 = jax.random.normal(ks[5], (N, c2, H, W), jnp.float32)
    out2 = jax.block_until_ready(fwd(x2, params2, downsample=False))
    ref2 = dis_block_reference(x2, params2, False)
    assert out2.shape == ref2.shape == (N, c2, H, W)
    assert bool(jnp.allclose(out2, ref2, atol=TOL, rtol=TOL)), "case2 mismatch"

    print("KERNEL_OK")
</pallas_src>

<mosaic_0001>
module attributes {stable_mosaic.version = 11 : i64} {
  func.func @_dis_block_kernel(%arg0: i32, %arg1: memref<4x768xbf16, #tpu.memory_space<vmem>>, %arg2: memref<1x672xf32, #tpu.memory_space<vmem>>, %arg3: memref<4x36xbf16, #tpu.memory_space<vmem>>, %arg4: memref<8x40xbf16, #tpu.memory_space<vmem>>, %arg5: memref<4x1xf32, #tpu.memory_space<vmem>>, %arg6: memref<8x1xf32, #tpu.memory_space<vmem>>, %arg7: memref<288x64xf32, #tpu.memory_space<vmem>>, %arg8: memref<8x128xf32, #tpu.memory_space<vmem>>, %arg9: memref<36x672xbf16, #tpu.memory_space<vmem>>, %arg10: memref<4x768xbf16, #tpu.memory_space<vmem>>, %arg11: memref<40x672xbf16, #tpu.memory_space<vmem>>) attributes {dimension_semantics = [#tpu.dimension_semantics<parallel>], iteration_bounds = array<i64: 1>, scalar_prefetch = 0 : i64, scratch_operands = 3 : i64, tpu.core_type = #tpu.core_type<tc>, window_params = [{transform_indices = @transform_0, window_bounds = array<i64: 4, 768>}, {pipeline_mode = #tpu.pipeline_mode<synchronous>, transform_indices = @transform_1, window_bounds = array<i64: 1, 672>}, {pipeline_mode = #tpu.pipeline_mode<synchronous>, transform_indices = @transform_2, window_bounds = array<i64: 4, 36>}, {pipeline_mode = #tpu.pipeline_mode<synchronous>, transform_indices = @transform_3, window_bounds = array<i64: 8, 40>}, {pipeline_mode = #tpu.pipeline_mode<synchronous>, transform_indices = @transform_4, window_bounds = array<i64: 4, 1>}, {pipeline_mode = #tpu.pipeline_mode<synchronous>, transform_indices = @transform_5, window_bounds = array<i64: 8, 1>}, {pipeline_mode = #tpu.pipeline_mode<synchronous>, transform_indices = @transform_6, window_bounds = array<i64: 288, 64>}, {transform_indices = @transform_7, window_bounds = array<i64: 8, 128>}]} {
    %c0 = arith.constant 0 : index
    %c0_0 = arith.constant 0 : index
    %0 = vector.load %arg1[%c0, %c0_0] : memref<4x768xbf16, #tpu.memory_space<vmem>>, vector<4x768xbf16>
    %cst = arith.constant 0.000000e+00 : bf16
    %1 = vector.broadcast %cst : bf16 to vector<4x768xbf16>
    %2 = arith.maximumf %0, %1 : vector<4x768xbf16>
    %3 = vector.extract_strided_slice %2 {offsets = [0, 0], sizes = [4, 672], strides = [1, 1]} : vector<4x768xbf16> to vector<4x672xbf16>
    %c0_1 = arith.constant 0 : index
    %c0_2 = arith.constant 0 : index
    %4 = vector.load %arg9[%c0_1, %c0_2] : memref<36x672xbf16, #tpu.memory_space<vmem>>, vector<4x672xbf16>
    tpu.vector_store %arg9[%c0_1, %c0_2], %3 {strides = array<i32>} : memref<36x672xbf16, #tpu.memory_space<vmem>>, vector<4x672xbf16>,
    %5 = vector.extract_strided_slice %2 {offsets = [0, 1], sizes = [4, 672], strides = [1, 1]} : vector<4x768xbf16> to vector<4x672xbf16>
    %c4 = arith.constant 4 : index
    %c0_3 = arith.constant 0 : index
    %6 = vector.load %arg9[%c4, %c0_3] : memref<36x672xbf16, #tpu.memory_space<vmem>>, vector<4x672xbf16>
    tpu.vector_store %arg9[%c4, %c0_3], %5 {strides = array<i32>} : memref<36x672xbf16, #tpu.memory_space<vmem>>, vector<4x672xbf16>,
    %7 = vector.extract_strided_slice %2 {offsets = [0, 2], sizes = [4, 672], strides = [1, 1]} : vector<4x768xbf16> to vector<4x672xbf16>
    %c8 = arith.constant 8 : index
    %c0_4 = arith.constant 0 : index
    %8 = vector.load %arg9[%c8, %c0_4] : memref<36x672xbf16, #tpu.memory_space<vmem>>, vector<4x672xbf16>
    tpu.vector_store %arg9[%c8, %c0_4], %7 {strides = array<i32>} : memref<36x672xbf16, #tpu.memory_space<vmem>>, vector<4x672xbf16>,
    %9 = vector.extract_strided_slice %2 {offsets = [0, 18], sizes = [4, 672], strides = [1, 1]} : vector<4x768xbf16> to vector<4x672xbf16>
    %c12 = arith.constant 12 : index
    %c0_5 = arith.constant 0 : index
    %10 = vector.load %arg9[%c12, %c0_5] : memref<36x672xbf16, #tpu.memory_space<vmem>>, vector<4x672xbf16>
    tpu.vector_store %arg9[%c12, %c0_5], %9 {strides = array<i32>} : memref<36x672xbf16, #tpu.memory_space<vmem>>, vector<4x672xbf16>,
    %11 = vector.extract_strided_slice %2 {offsets = [0, 19], sizes = [4, 672], strides = [1, 1]} : vector<4x768xbf16> to vector<4x672xbf16>
    %c16 = arith.constant 16 : index
    %c0_6 = arith.constant 0 : index
    %12 = vector.load %arg9[%c16, %c0_6] : memref<36x672xbf16, #tpu.memory_space<vmem>>, vector<4x672xbf16>
    tpu.vector_store %arg9[%c16, %c0_6], %11 {strides = array<i32>} : memref<36x672xbf16, #tpu.memory_space<vmem>>, vector<4x672xbf16>,
    %13 = vector.extract_strided_slice %2 {offsets = [0, 20], sizes = [4, 672], strides = [1, 1]} : vector<4x768xbf16> to vector<4x672xbf16>
    %c20 = arith.constant 20 : index
    %c0_7 = arith.constant 0 : index
    %14 = vector.load %arg9[%c20, %c0_7] : memref<36x672xbf16, #tpu.memory_space<vmem>>, vector<4x672xbf16>
    tpu.vector_store %arg9[%c20, %c0_7], %13 {strides = array<i32>} : memref<36x672xbf16, #tpu.memory_space<vmem>>, vector<4x672xbf16>,
    %15 = vector.extract_strided_slice %2 {offsets = [0, 36], sizes = [4, 672], strides = [1, 1]} : vector<4x768xbf16> to vector<4x672xbf16>
    %c24 = arith.constant 24 : index
    %c0_8 = arith.constant 0 : index
    %16 = vector.load %arg9[%c24, %c0_8] : memref<36x672xbf16, #tpu.memory_space<vmem>>, vector<4x672xbf16>
    tpu.vector_store %arg9[%c24, %c0_8], %15 {strides = array<i32>} : memref<36x672xbf16, #tpu.memory_space<vmem>>, vector<4x672xbf16>,
    %17 = vector.extract_strided_slice %2 {offsets = [0, 37], sizes = [4, 672], strides = [1, 1]} : vector<4x768xbf16> to vector<4x672xbf16>
    %c28 = arith.constant 28 : index
    %c0_9 = arith.constant 0 : index
    %18 = vector.load %arg9[%c28, %c0_9] : memref<36x672xbf16, #tpu.memory_space<vmem>>, vector<4x672xbf16>
    tpu.vector_store %arg9[%c28, %c0_9], %17 {strides = array<i32>} : memref<36x672xbf16, #tpu.memory_space<vmem>>, vector<4x672xbf16>,
    %19 = vector.extract_strided_slice %2 {offsets = [0, 38], sizes = [4, 672], strides = [1, 1]} : vector<4x768xbf16> to vector<4x672xbf16>
    %c32 = arith.constant 32 : index
    %c0_10 = arith.constant 0 : index
    %20 = vector.load %arg9[%c32, %c0_10] : memref<36x672xbf16, #tpu.memory_space<vmem>>, vector<4x672xbf16>
    tpu.vector_store %arg9[%c32, %c0_10], %19 {strides = array<i32>} : memref<36x672xbf16, #tpu.memory_space<vmem>>, vector<4x672xbf16>,
    %c0_11 = arith.constant 0 : index
    %c0_12 = arith.constant 0 : index
    %21 = vector.load %arg3[%c0_11, %c0_12] : memref<4x36xbf16, #tpu.memory_space<vmem>>, vector<4x36xbf16>
    %c0_13 = arith.constant 0 : index
    %c0_14 = arith.constant 0 : index
    %22 = vector.load %arg9[%c0_13, %c0_14] : memref<36x672xbf16, #tpu.memory_space<vmem>>, vector<36x672xbf16>
    %cst_15 = arith.constant dense<0.000000e+00> : vector<4x672xf32>
    %23 = tpu.matmul %21, %22, %cst_15 {dimension_numbers = #tpu.dot_dimension_numbers<[1], [0], [0], [1], [0, 0, 1, 1], [], []>} : vector<4x36xbf16>, vector<36x672xbf16>, vector<4x672xf32> -> vector<4x672xf32>
    %c0_16 = arith.constant 0 : index
    %c0_17 = arith.constant 0 : index
    %24 = vector.load %arg5[%c0_16, %c0_17] : memref<4x1xf32, #tpu.memory_space<vmem>>, vector<4x1xf32>
    %25 = vector.broadcast %24 : vector<4x1xf32> to vector<4x672xf32>
    %26 = arith.addf %23, %25 : vector<4x672xf32>
    %cst_18 = arith.constant 0.000000e+00 : f32
    %27 = vector.broadcast %cst_18 : f32 to vector<4x672xf32>
    %28 = arith.maximumf %26, %27 : vector<4x672xf32>
    %c0_19 = arith.constant 0 : index
    %c0_20 = arith.constant 0 : index
    %29 = vector.load %arg2[%c0_19, %c0_20] : memref<1x672xf32, #tpu.memory_space<vmem>>, vector<1x672xf32>
    %30 = vector.broadcast %29 : vector<1x672xf32> to vector<4x672xf32>
    %31 = arith.mulf %28, %30 : vector<4x672xf32>
    %32 = arith.truncf %31 : vector<4x672xf32> to vector<4x672xbf16>
    %cst_21 = arith.constant 0.000000e+00 : bf16
    %33 = vector.broadcast %cst_21 : bf16 to vector<4x19xbf16>
    %c0_22 = arith.constant 0 : index
    %c0_23 = arith.constant 0 : index
    %34 = vector.load %arg10[%c0_22, %c0_23] : memref<4x768xbf16, #tpu.memory_space<vmem>>, vector<4x19xbf16>
    tpu.vector_store %arg10[%c0_22, %c0_23], %33 {strides = array<i32>} : memref<4x768xbf16, #tpu.memory_space<vmem>>, vector<4x19xbf16>,
    %cst_24 = arith.constant 0.000000e+00 : bf16
    %35 = vector.broadcast %cst_24 : bf16 to vector<4x77xbf16>
    %c0_25 = arith.constant 0 : index
    %c691 = arith.constant 691 : index
    %36 = vector.load %arg10[%c0_25, %c691] : memref<4x768xbf16, #tpu.memory_space<vmem>>, vector<4x77xbf16>
    tpu.vector_store %arg10[%c0_25, %c691], %35 {strides = array<i32>} : memref<4x768xbf16, #tpu.memory_space<vmem>>, vector<4x77xbf16>,
    %c0_26 = arith.constant 0 : index
    %c19 = arith.constant 19 : index
    %37 = vector.load %arg10[%c0_26, %c19] : memref<4x768xbf16, #tpu.memory_space<vmem>>, vector<4x672xbf16>
    tpu.vector_store %arg10[%c0_26, %c19], %32 {strides = array<i32>} : memref<4x768xbf16, #tpu.memory_space<vmem>>, vector<4x672xbf16>,
    %c0_27 = arith.constant 0 : index
    %c0_28 = arith.constant 0 : index
    %38 = vector.load %arg10[%c0_27, %c0_28] : memref<4x768xbf16, #tpu.memory_space<vmem>>, vector<4x672xbf16>
    %c0_29 = arith.constant 0 : index
    %c0_30 = arith.constant 0 : index
    %39 = vector.load %arg11[%c0_29, %c0_30] : memref<40x672xbf16, #tpu.memory_space<vmem>>, vector<4x672xbf16>
    tpu.vector_store %arg11[%c0_29, %c0_30], %38 {strides = array<i32>} : memref<40x672xbf16, #tpu.memory_space<vmem>>, vector<4x672xbf16>,
    %c0_31 = arith.constant 0 : index
    %c1 = arith.constant 1 : index
    %40 = vector.load %arg10[%c0_31, %c1] : memref<4x768xbf16, #tpu.memory_space<vmem>>, vector<4x672xbf16>
    %c4_32 = arith.constant 4 : index
    %c0_33 = arith.constant 0 : index
    %41 = vector.load %arg11[%c4_32, %c0_33] : memref<40x672xbf16, #tpu.memory_space<vmem>>, vector<4x672xbf16>
    tpu.vector_store %arg11[%c4_32, %c0_33], %40 {strides = array<i32>} : memref<40x672xbf16, #tpu.memory_space<vmem>>, vector<4x672xbf16>,
    %c0_34 = arith.constant 0 : index
    %c2 = arith.constant 2 : index
    %42 = vector.load %arg10[%c0_34, %c2] : memref<4x768xbf16, #tpu.memory_space<vmem>>, vector<4x672xbf16>
    %c8_35 = arith.constant 8 : index
    %c0_36 = arith.constant 0 : index
    %43 = vector.load %arg11[%c8_35, %c0_36] : memref<40x672xbf16, #tpu.memory_space<vmem>>, vector<4x672xbf16>
    tpu.vector_store %arg11[%c8_35, %c0_36], %42 {strides = array<i32>} : memref<40x672xbf16, #tpu.memory_space<vmem>>, vector<4x672xbf16>,
    %c0_37 = arith.constant 0 : index
    %c18 = arith.constant 18 : index
    %44 = vector.load %arg10[%c0_37, %c18] : memref<4x768xbf16, #tpu.memory_space<vmem>>, vector<4x672xbf16>
    %c12_38 = arith.constant 12 : index
    %c0_39 = arith.constant 0 : index
    %45 = vector.load %arg11[%c12_38, %c0_39] : memref<40x672xbf16, #tpu.memory_space<vmem>>, vector<4x672xbf16>
    tpu.vector_store %arg11[%c12_38, %c0_39], %44 {strides = array<i32>} : memref<40x672xbf16, #tpu.memory_space<vmem>>, vector<4x672xbf16>,
    %c0_40 = arith.constant 0 : index
    %c19_41 = arith.constant 19 : index
    %46 = vector.load %arg10[%c0_40, %c19_41] : memref<4x768xbf16, #tpu.memory_space<vmem>>, vector<4x672xbf16>
    %c16_42 = arith.constant 16 : index
    %c0_43 = arith.constant 0 : index
    %47 = vector.load %arg11[%c16_42, %c0_43] : memref<40x672xbf16, #tpu.memory_space<vmem>>, vector<4x672xbf16>
    tpu.vector_store %arg11[%c16_42, %c0_43], %46 {strides = array<i32>} : memref<40x672xbf16, #tpu.memory_space<vmem>>, vector<4x672xbf16>,
    %c0_44 = arith.constant 0 : index
    %c20_45 = arith.constant 20 : index
    %48 = vector.load %arg10[%c0_44, %c20_45] : memref<4x768xbf16, #tpu.memory_space<vmem>>, vector<4x672xbf16>
    %c20_46 = arith.constant 20 : index
    %c0_47 = arith.constant 0 : index
    %49 = vector.load %arg11[%c20_46, %c0_47] : memref<40x672xbf16, #tpu.memory_space<vmem>>, vector<4x672xbf16>
    tpu.vector_store %arg11[%c20_46, %c0_47], %48 {strides = array<i32>} : memref<40x672xbf16, #tpu.memory_space<vmem>>, vector<4x672xbf16>,
    %c0_48 = arith.constant 0 : index
    %c36 = arith.constant 36 : index
    %50 = vector.load %arg10[%c0_48, %c36] : memref<4x768xbf16, #tpu.memory_space<vmem>>, vector<4x672xbf16>
    %c24_49 = arith.constant 24 : index
    %c0_50 = arith.constant 0 : index
    %51 = vector.load %arg11[%c24_49, %c0_50] : memref<40x672xbf16, #tpu.memory_space<vmem>>, vector<4x672xbf16>
    tpu.vector_store %arg11[%c24_49, %c0_50], %50 {strides = array<i32>} : memref<40x672xbf16, #tpu.memory_space<vmem>>, vector<4x672xbf16>,
    %c0_51 = arith.constant 0 : index
    %c37 = arith.constant 37 : index
    %52 = vector.load %arg10[%c0_51, %c37] : memref<4x768xbf16, #tpu.memory_space<vmem>>, vector<4x672xbf16>
    %c28_52 = arith.constant 28 : index
    %c0_53 = arith.constant 0 : index
    %53 = vector.load %arg11[%c28_52, %c0_53] : memref<40x672xbf16, #tpu.memory_space<vmem>>, vector<4x672xbf16>
    tpu.vector_store %arg11[%c28_52, %c0_53], %52 {strides = array<i32>} : memref<40x672xbf16, #tpu.memory_space<vmem>>, vector<4x672xbf16>,
    %c0_54 = arith.constant 0 : index
    %c38 = arith.constant 38 : index
    %54 = vector.load %arg10[%c0_54, %c38] : memref<4x768xbf16, #tpu.memory_space<vmem>>, vector<4x672xbf16>
    %c32_55 = arith.constant 32 : index
    %c0_56 = arith.constant 0 : index
    %55 = vector.load %arg11[%c32_55, %c0_56] : memref<40x672xbf16, #tpu.memory_space<vmem>>, vector<4x672xbf16>
    tpu.vector_store %arg11[%c32_55, %c0_56], %54 {strides = array<i32>} : memref<40x672xbf16, #tpu.memory_space<vmem>>, vector<4x672xbf16>,
    %c0_57 = arith.constant 0 : index
    %c19_58 = arith.constant 19 : index
    %56 = vector.load %arg1[%c0_57, %c19_58] : memref<4x768xbf16, #tpu.memory_space<vmem>>, vector<4x672xbf16>
    %c36_59 = arith.constant 36 : index
    %c0_60 = arith.constant 0 : index
    %57 = vector.load %arg11[%c36_59, %c0_60] : memref<40x672xbf16, #tpu.memory_space<vmem>>, vector<4x672xbf16>
    tpu.vector_store %arg11[%c36_59, %c0_60], %56 {strides = array<i32>} : memref<40x672xbf16, #tpu.memory_space<vmem>>, vector<4x672xbf16>,
    %c0_61 = arith.constant 0 : index
    %c0_62 = arith.constant 0 : index
    %58 = vector.load %arg4[%c0_61, %c0_62] : memref<8x40xbf16, #tpu.memory_space<vmem>>, vector<8x40xbf16>
    %c0_63 = arith.constant 0 : index
    %c0_64 = arith.constant 0 : index
    %59 = vector.load %arg11[%c0_63, %c0_64] : memref<40x672xbf16, #tpu.memory_space<vmem>>, vector<40x672xbf16>
    %cst_65 = arith.constant dense<0.000000e+00> : vector<8x672xf32>
    %60 = tpu.matmul %58, %59, %cst_65 {dimension_numbers = #tpu.dot_dimension_numbers<[1], [0], [0], [1], [0, 0, 1, 1], [], []>} : vector<8x40xbf16>, vector<40x672xbf16>, vector<8x672xf32> -> vector<8x672xf32>
    %61 = vector.extract_strided_slice %60 {offsets = [0, 0], sizes = [8, 288], strides = [1, 1]} : vector<8x672xf32> to vector<8x288xf32>
    %c0_66 = arith.constant 0 : index
    %c0_67 = arith.constant 0 : index
    %62 = vector.load %arg7[%c0_66, %c0_67] : memref<288x64xf32, #tpu.memory_space<vmem>>, vector<288x64xf32>
    %cst_68 = arith.constant dense<0.000000e+00> : vector<8x64xf32>
    %63 = tpu.matmul %61, %62, %cst_68 {dimension_numbers = #tpu.dot_dimension_numbers<[1], [0], [0], [1], [0, 0, 1, 1], [], []>} : vector<8x288xf32>, vector<288x64xf32>, vector<8x64xf32> -> vector<8x64xf32>
    %64 = vector.extract_strided_slice %60 {offsets = [0, 384], sizes = [8, 288], strides = [1, 1]} : vector<8x672xf32> to vector<8x288xf32>
    %c0_69 = arith.constant 0 : index
    %c0_70 = arith.constant 0 : index
    %65 = vector.load %arg7[%c0_69, %c0_70] : memref<288x64xf32, #tpu.memory_space<vmem>>, vector<288x64xf32>
    %cst_71 = arith.constant dense<0.000000e+00> : vector<8x64xf32>
    %66 = tpu.matmul %64, %65, %cst_71 {dimension_numbers = #tpu.dot_dimension_numbers<[1], [0], [0], [1], [0, 0, 1, 1], [], []>} : vector<8x288xf32>, vector<288x64xf32>, vector<8x64xf32> -> vector<8x64xf32>
    %67 = tpu.concatenate %63, %66 in 1 : vector<8x64xf32>, vector<8x64xf32> -> vector<8x128xf32>
    %c0_72 = arith.constant 0 : index
    %c0_73 = arith.constant 0 : index
    %68 = vector.load %arg6[%c0_72, %c0_73] : memref<8x1xf32, #tpu.memory_space<vmem>>, vector<8x1xf32>
    %69 = vector.broadcast %68 : vector<8x1xf32> to vector<8x128xf32>
    %70 = arith.addf %67, %69 : vector<8x128xf32>
    %c0_74 = arith.constant 0 : index
    %c0_75 = arith.constant 0 : index
    %71 = vector.load %arg8[%c0_74, %c0_75] : memref<8x128xf32, #tpu.memory_space<vmem>>, vector<8x128xf32>
    tpu.vector_store %arg8[%c0_74, %c0_75], %70 {strides = array<i32>} : memref<8x128xf32, #tpu.memory_space<vmem>>, vector<8x128xf32>,
    return
  }
  func.func @transform_0(%arg0: i32) -> (i32, i32) {
    %c0_i32 = arith.constant 0 : i32
    %c0_i32_0 = arith.constant 0 : i32
    return %c0_i32, %arg0 : i32, i32
  }
  func.func @transform_1(%arg0: i32) -> (i32, i32) {
    %c0_i32 = arith.constant 0 : i32
    %c0_i32_0 = arith.constant 0 : i32
    %c0_i32_1 = arith.constant 0 : i32
    return %c0_i32, %c0_i32_0 : i32, i32
  }
  func.func @transform_2(%arg0: i32) -> (i32, i32) {
    %c0_i32 = arith.constant 0 : i32
    %c0_i32_0 = arith.constant 0 : i32
    %c0_i32_1 = arith.constant 0 : i32
    return %c0_i32, %c0_i32_0 : i32, i32
  }
  func.func @transform_3(%arg0: i32) -> (i32, i32) {
    %c0_i32 = arith.constant 0 : i32
    %c0_i32_0 = arith.constant 0 : i32
    %c0_i32_1 = arith.constant 0 : i32
    return %c0_i32, %c0_i32_0 : i32, i32
  }
  func.func @transform_4(%arg0: i32) -> (i32, i32) {
    %c0_i32 = arith.constant 0 : i32
    %c0_i32_0 = arith.constant 0 : i32
    %c0_i32_1 = arith.constant 0 : i32
    return %c0_i32, %c0_i32_0 : i32, i32
  }
  func.func @transform_5(%arg0: i32) -> (i32, i32) {
    %c0_i32 = arith.constant 0 : i32
    %c0_i32_0 = arith.constant 0 : i32
    %c0_i32_1 = arith.constant 0 : i32
    return %c0_i32, %c0_i32_0 : i32, i32
  }
  func.func @transform_6(%arg0: i32) -> (i32, i32) {
    %c0_i32 = arith.constant 0 : i32
    %c0_i32_0 = arith.constant 0 : i32
    %c0_i32_1 = arith.constant 0 : i32
    return %c0_i32, %c0_i32_0 : i32, i32
  }
  func.func @transform_7(%arg0: i32) -> (i32, i32) {
    %c0_i32 = arith.constant 0 : i32
    %c0_i32_0 = arith.constant 0 : i32
    return %c0_i32, %arg0 : i32, i32
  }
}

</mosaic_0001>

<llo_original>
// kernel: dis_block_forward.1
$region0: #{dis_block_forward.1}
  #allocation0 [shape = 'u32[]', space=smem, size = 0x4, offset = 0x4, fixed_abs, tag = 'smem constant byte address 0x4 - core index']
  #allocation1 [shape = 'u32[144,128]{1,0:T(1,128)}', space=vmem, size = 0x12000, scoped, tag = 'internal scratch']
  #allocation2 [shape = 'bf16[36,672]{1,0:T(8,128)(2,1)}', space=vmem, size = 0xf000, scoped, tag = 'scratch operand']
  #allocation3 [shape = 'bf16[4,768]{1,0:T(4,128)(2,1)}', space=vmem, size = 0x1800, scoped, tag = 'scratch operand']
  #allocation4 [shape = 'bf16[40,672]{1,0:T(8,128)(2,1)}', space=vmem, size = 0xf000, scoped, tag = 'scratch operand']
  %s0 = inlined_call_operand.vmem [shape: bf16[4,768], index: 0, kind: input, shape index: {}]
  %s1 = inlined_call_operand.vmem [shape: f32[1,672], index: 1, kind: input, shape index: {}]
  %s2 = inlined_call_operand.vmem [shape: bf16[4,36], index: 2, kind: input, shape index: {}]
  %s3 = inlined_call_operand.vmem [shape: bf16[8,40], index: 3, kind: input, shape index: {}]
  %s4 = inlined_call_operand.vmem [shape: f32[4,1], index: 4, kind: input, shape index: {}]
  %s5 = inlined_call_operand.vmem [shape: f32[8,1], index: 5, kind: input, shape index: {}]
  %s6 = inlined_call_operand.vmem [shape: f32[288,64], index: 6, kind: input, shape index: {}]
  %s7 = inlined_call_operand.vmem [shape: f32[8,128], index: 7, kind: output, shape index: {}]
  %s8 = sld [smem:[#allocation0]]
  $region38: #{dis_block_forward.1} parent=0
    _
  %s10 = ssub.s32 1, %s8
  %s11 = scalar_select 0, %s10, %s8
  // Predicated region
  $region2: #{dis_block_forward.1} parent=0 // pred_check
    _
  $region3: #{dis_block_forward.1} parent=0 // pred_check_branch
    %13 = sbr.rel (0) target = $region5
  $region4: #{dis_block_forward.1} parent=0 // pred_region
    _
  $region5: #{dis_block_forward.1} parent=0 // pred_fallthru
    _
  // Predicated region
  $region6: #{dis_block_forward.1} parent=0 // pred_check
    _
  $region7: #{dis_block_forward.1} parent=0 // pred_check_branch
    %15 = sbr.rel (0) target = $region9
  $region8: #{dis_block_forward.1} parent=0 // pred_region
    _
  $region9: #{dis_block_forward.1} parent=0 // pred_fallthru
    _
  // Predicated region
  $region10: #{dis_block_forward.1} parent=0 // pred_check
    _
  $region11: #{dis_block_forward.1} parent=0 // pred_check_branch
    %17 = sbr.rel (0) target = $region13
  $region12: #{dis_block_forward.1} parent=0 // pred_region
    _
  $region13: #{dis_block_forward.1} parent=0 // pred_fallthru
    _
  // Predicated region
  $region14: #{dis_block_forward.1} parent=0 // pred_check
    _
  $region15: #{dis_block_forward.1} parent=0 // pred_check_branch
    %19 = sbr.rel (0) target = $region17
  $region16: #{dis_block_forward.1} parent=0 // pred_region
    _
  $region17: #{dis_block_forward.1} parent=0 // pred_fallthru
    _
  // Predicated region
  $region18: #{dis_block_forward.1} parent=0 // pred_check
    _
  $region19: #{dis_block_forward.1} parent=0 // pred_check_branch
    %21 = sbr.rel (0) target = $region21
  $region20: #{dis_block_forward.1} parent=0 // pred_region
    _
  $region21: #{dis_block_forward.1} parent=0 // pred_fallthru
    _
  // Predicated region
  $region22: #{dis_block_forward.1} parent=0 // pred_check
    _
  $region23: #{dis_block_forward.1} parent=0 // pred_check_branch
    %23 = sbr.rel (0) target = $region25
  $region24: #{dis_block_forward.1} parent=0 // pred_region
    _
  $region25: #{dis_block_forward.1} parent=0 // pred_fallthru
    _
  // Predicated region
  $region26: #{dis_block_forward.1} parent=0 // pred_check
    _
  $region27: #{dis_block_forward.1} parent=0 // pred_check_branch
    %25 = sbr.rel (0) target = $region29
  $region28: #{dis_block_forward.1} parent=0 // pred_region
    _
  $region29: #{dis_block_forward.1} parent=0 // pred_fallthru
    _
  %v27 = vld [vmem:[%s0] sm:$0xff]
  %v28 = vld [vmem:[%s0 + $0x8] sm:$0xf]
  %v29 = vmax.bf16 %v27, 0
  %v30 = vmax.bf16 %v28, 0
  %v33 = vcombine.high %v29, %v29
  %v35 = vunpack.c.l.s4 1983009808
  %v36 = vunpack.c.0.s8 %v35
  %v37 = vlaneseq
  %v38 = vshrl.u32 %v37, 7
  %v39 = vsub.s32 %v36, %v38
  %v40 = vrot.slane %v29, %v39
  %v42 = vunpack.c.l.s4 1983009808
  %v43 = vunpack.c.0.s8 %v42
  %v44 = vlaneseq
  %v45 = vshrl.u32 %v44, 7
  %v46 = vsub.s32 %v43, %v45
  %v47 = vrot.slane %v33, %v46
  %v49 = vunpack.c.l.s4 1983009808
  %v50 = vunpack.c.0.s8 %v49
  %v51 = vlaneseq
  %v52 = vshrl.u32 %v51, 7
  %v53 = vsub.s32 %v50, %v52
  %v54 = vrot.slane %v30, %v53
  %58 = vst [vmem:[#allocation2] sm:$0x33] %v40
  %59 = vst [vmem:[#allocation2 + $0x8] sm:$0x33] %v47
  %vm60 = vcmask 1041408
  %vm61 = vcmask 259076
  %vm62 = vmor %vm61, %vm60
  %63 = vst.msk [vmem:[#allocation2 + $0x10] sm:$0x33] %vm62, %v54
  %v64 = vcombine.low %v29, %v29
  %v66 = vunpack.c.l.s4 1983009808
  %v67 = vunpack.c.0.s8 %v66
  %v68 = vlaneseq
  %v69 = vshrl.u32 %v68, 7
  %v70 = vsub.s32 %v67, %v69
  %v71 = vrot.slane %v64, %v70
  %v72 = vcombine.low %v30, %v30
  %v74 = vunpack.c.l.s4 1983009808
  %v75 = vunpack.c.0.s8 %v74
  %v76 = vlaneseq
  %v77 = vshrl.u32 %v76, 7
  %v78 = vsub.s32 %v75, %v77
  %v79 = vrot.slane %v72, %v78
  %80 = vrot.lane.b32.xlu0 %v71, 127
  %v81 = vpop.permute.xlu0 %80
  %82 = vrot.lane.b32.xlu0 %v40, 127
  %v83 = vpop.permute.xlu0 %82
  %84 = vrot.lane.b32.xlu0 %v79, 127
  %v85 = vpop.permute.xlu0 %84
  %v86 = vrot.slane %v81, 4
  %v87 = vrot.slane %v83, 4
  %v88 = vrot.slane %v85, 4
  %vm89 = vcmask 1043456
  %v90 = vsel %vm89, %v86, %v87
  %vm91 = vcmask 1039360
  %v92 = vsel %vm91, %v81, %v90
  %v93 = vsel %vm89, %v87, %v88
  %v94 = vsel %vm91, %v83, %v93
  %v95 = vsel %vm91, %v85, %v88
  %99 = vst [vmem:[#allocation2] sm:$0xcc] %v92
  %100 = vst [vmem:[#allocation2 + $0x8] sm:$0xcc] %v94
  %vm101 = vcmask 1043458
  %vm102 = vcmask 261126
  %vm103 = vmor %vm102, %vm101
  %104 = vst.msk [vmem:[#allocation2 + $0x10] sm:$0xcc] %vm103, %v95
  %105 = vrot.lane.b32.xlu0 %v40, 126
  %v106 = vpop.permute.xlu0 %105
  %107 = vrot.lane.b32.xlu0 %v47, 126
  %v108 = vpop.permute.xlu0 %107
  %109 = vrot.lane.b32.xlu0 %v54, 126
  %v110 = vpop.permute.xlu0 %109
  %v111 = vrot.slane %v106, 4
  %v112 = vrot.slane %v108, 4
  %v113 = vrot.slane %v110, 4
  %v114 = vsel %vm89, %v111, %v112
  %vm115 = vcmask 1031168
  %v116 = vsel %vm115, %v106, %v114
  %v117 = vsel %vm89, %v112, %v113
  %v118 = vsel %vm115, %v108, %v117
  %v119 = vsel %vm115, %v110, %v113
  %123 = vst [vmem:[#allocation2 + $0x18] sm:$0x33] %v116
  %124 = vst [vmem:[#allocation2 + $0x20] sm:$0x33] %v118
  %125 = vst.msk [vmem:[#allocation2 + $0x28] sm:$0x33] %vm62, %v119
  %126 = vrot.lane.b32.xlu0 %v71, 110
  %v127 = vpop.permute.xlu0 %126
  %128 = vrot.lane.b32.xlu0 %v40, 110
  %v129 = vpop.permute.xlu0 %128
  %130 = vrot.lane.b32.xlu0 %v79, 110
  %v131 = vpop.permute.xlu0 %130
  %v132 = vrot.slane %v127, 4
  %v133 = vrot.slane %v129, 4
  %v134 = vrot.slane %v131, 4
  %v135 = vsel %vm89, %v132, %v133
  %vm136 = vcmask 900096
  %v137 = vsel %vm136, %v127, %v135
  %v138 = vsel %vm89, %v133, %v134
  %v139 = vsel %vm136, %v129, %v138
  %v140 = vsel %vm136, %v131, %v134
  %144 = vst [vmem:[#allocation2 + $0x18] sm:$0xcc] %v137
  %145 = vst [vmem:[#allocation2 + $0x20] sm:$0xcc] %v139
  %146 = vst.msk [vmem:[#allocation2 + $0x28] sm:$0xcc] %vm103, %v140
  %147 = vrot.lane.b32.xlu0 %v40, 109
  %v148 = vpop.permute.xlu0 %147
  %149 = vrot.lane.b32.xlu0 %v47, 109
  %v150 = vpop.permute.xlu0 %149
  %151 = vrot.lane.b32.xlu0 %v54, 109
  %v152 = vpop.permute.xlu0 %151
  %v153 = vrot.slane %v148, 4
  %v154 = vrot.slane %v150, 4
  %v155 = vrot.slane %v152, 4
  %v156 = vsel %vm89, %v153, %v154
  %vm157 = vcmask 891904
  %v158 = vsel %vm157, %v148, %v156
  %v159 = vsel %vm89, %v154, %v155
  %v160 = vsel %vm157, %v150, %v159
  %v161 = vsel %vm157, %v152, %v155
  %165 = vst [vmem:[#allocation2 + $0x30] sm:$0x33] %v158
  %166 = vst [vmem:[#allocation2 + $0x38] sm:$0x33] %v160
  %167 = vst.msk [vmem:[#allocation2 + $0x40] sm:$0x33] %vm62, %v161
  %168 = vrot.lane.b32.xlu0 %v71, 108
  %v169 = vpop.permute.xlu0 %168
  %170 = vrot.lane.b32.xlu0 %v40, 108
  %v171 = vpop.permute.xlu0 %170
  %172 = vrot.lane.b32.xlu0 %v79, 108
  %v173 = vpop.permute.xlu0 %172
  %v174 = vrot.slane %v169, 4
  %v175 = vrot.slane %v171, 4
  %v176 = vrot.slane %v173, 4
  %v177 = vsel %vm89, %v174, %v175
  %vm178 = vcmask 883712
  %v179 = vsel %vm178, %v169, %v177
  %v180 = vsel %vm89, %v175, %v176
  %v181 = vsel %vm178, %v171, %v180
  %v182 = vsel %vm178, %v173, %v176
  %186 = vst [vmem:[#allocation2 + $0x30] sm:$0xcc] %v179
  %187 = vst [vmem:[#allocation2 + $0x38] sm:$0xcc] %v181
  %188 = vst.msk [vmem:[#allocation2 + $0x40] sm:$0xcc] %vm103, %v182
  %189 = vrot.lane.b32.xlu0 %v40, 92
  %v190 = vpop.permute.xlu0 %189
  %191 = vrot.lane.b32.xlu0 %v47, 92
  %v192 = vpop.permute.xlu0 %191
  %193 = vrot.lane.b32.xlu0 %v54, 92
  %v194 = vpop.permute.xlu0 %193
  %v195 = vrot.slane %v190, 4
  %v196 = vrot.slane %v192, 4
  %v197 = vrot.slane %v194, 4
  %v198 = vsel %vm89, %v195, %v196
  %vm199 = vcmask 752640
  %v200 = vsel %vm199, %v190, %v198
  %v201 = vsel %vm89, %v196, %v197
  %v202 = vsel %vm199, %v192, %v201
  %v203 = vsel %vm199, %v194, %v197
  %207 = vst [vmem:[#allocation2 + $0x48] sm:$0x33] %v200
  %208 = vst [vmem:[#allocation2 + $0x50] sm:$0x33] %v202
  %209 = vst.msk [vmem:[#allocation2 + $0x58] sm:$0x33] %vm62, %v203
  %210 = vrot.lane.b32.xlu0 %v71, 91
  %v211 = vpop.permute.xlu0 %210
  %212 = vrot.lane.b32.xlu0 %v40, 91
  %v213 = vpop.permute.xlu0 %212
  %214 = vrot.lane.b32.xlu0 %v79, 91
  %v215 = vpop.permute.xlu0 %214
  %v216 = vrot.slane %v211, 4
  %v217 = vrot.slane %v213, 4
  %v218 = vrot.slane %v215, 4
  %v219 = vsel %vm89, %v216, %v217
  %vm220 = vcmask 744448
  %v221 = vsel %vm220, %v211, %v219
  %v222 = vsel %vm89, %v217, %v218
  %v223 = vsel %vm220, %v213, %v222
  %v224 = vsel %vm220, %v215, %v218
  %228 = vst [vmem:[#allocation2 + $0x48] sm:$0xcc] %v221
  %229 = vst [vmem:[#allocation2 + $0x50] sm:$0xcc] %v223
  %230 = vst.msk [vmem:[#allocation2 + $0x58] sm:$0xcc] %vm103, %v224
  %231 = vrot.lane.b32.xlu0 %v40, 90
  %v232 = vpop.permute.xlu0 %231
  %233 = vrot.lane.b32.xlu0 %v47, 90
  %v234 = vpop.permute.xlu0 %233
  %235 = vrot.lane.b32.xlu0 %v54, 90
  %v236 = vpop.permute.xlu0 %235
  %v237 = vrot.slane %v232, 4
  %v238 = vrot.slane %v234, 4
  %v239 = vrot.slane %v236, 4
  %v240 = vsel %vm89, %v237, %v238
  %vm241 = vcmask 736256
  %v242 = vsel %vm241, %v232, %v240
  %v243 = vsel %vm89, %v238, %v239
  %v244 = vsel %vm241, %v234, %v243
  %v245 = vsel %vm241, %v236, %v239
  %249 = vst [vmem:[#allocation2 + $0x60] sm:$0x33] %v242
  %250 = vst [vmem:[#allocation2 + $0x68] sm:$0x33] %v244
  %251 = vst.msk [vmem:[#allocation2 + $0x70] sm:$0x33] %vm62, %v245
  %v252 = vld [vmem:[%s2] sm:$0x3]
  %v253 = vld [vmem:[#allocation2] sm:$0xff]
  %v254 = vld [vmem:[#allocation2 + $0x8] sm:$0xff]
  %v255 = vld [vmem:[#allocation2 + $0x10] sm:$0xff]
  %v256 = vld [vmem:[#allocation2 + $0x18] sm:$0xff]
  %v257 = vld [vmem:[#allocation2 + $0x20] sm:$0xff]
  %v258 = vld [vmem:[#allocation2 + $0x28] sm:$0xff]
  %v259 = vld [vmem:[#allocation2 + $0x30] sm:$0xff]
  %v260 = vld [vmem:[#allocation2 + $0x38] sm:$0xff]
  %v261 = vld [vmem:[#allocation2 + $0x40] sm:$0xff]
  %v262 = vld [vmem:[#allocation2 + $0x48] sm:$0xff]
  %v263 = vld [vmem:[#allocation2 + $0x50] sm:$0xff]
  %v264 = vld [vmem:[#allocation2 + $0x58] sm:$0xff]
  %v265 = vld [vmem:[#allocation2 + $0x60] sm:$0x33]
  %v266 = vld [vmem:[#allocation2 + $0x68] sm:$0x33]
  %v267 = vld [vmem:[#allocation2 + $0x70] sm:$0x33]
  %v268 = vld [vmem:[%s4] sm:$0xf]
  %270 = vset.pattern.permute.xlu0 0
  %271 = vperm.xlu0 %270, %v268
  %v272 = vpop.permute.xlu0 %271
  %v289 = vunpack.c.l.b16 %v253
  %v290 = vunpack.c.h.b16 %v253
  %v291 = vunpack.c.l.b16 %v254
  %v292 = vunpack.c.h.b16 %v254
  %v293 = vunpack.c.l.b16 %v255
  %v294 = vunpack.c.h.b16 %v255
  %v295 = vunpack.c.l.b16 %v256
  %v296 = vunpack.c.h.b16 %v256
  %v297 = vunpack.c.l.b16 %v257
  %v298 = vunpack.c.h.b16 %v257
  %v299 = vunpack.c.l.b16 %v258
  %v300 = vunpack.c.h.b16 %v258
  %v301 = vunpack.c.l.b16 %v259
  %v302 = vunpack.c.h.b16 %v259
  %v303 = vunpack.c.l.b16 %v260
  %v304 = vunpack.c.h.b16 %v260
  %v305 = vunpack.c.l.b16 %v261
  %v306 = vunpack.c.h.b16 %v261
  %v307 = vunpack.c.l.b16 %v262
  %v308 = vunpack.c.h.b16 %v262
  %v309 = vunpack.c.l.b16 %v263
  %v310 = vunpack.c.h.b16 %v263
  %v311 = vunpack.c.l.b16 %v264
  %v312 = vunpack.c.h.b16 %v264
  %v313 = vunpack.c.l.b16 %v265
  %v314 = vunpack.c.h.b16 %v265
  %v315 = vunpack.c.l.b16 %v266
  %v316 = vunpack.c.h.b16 %v266
  %v317 = vunpack.c.l.b16 %v267
  %v318 = vunpack.c.h.b16 %v267
  %v319 = vpack.c.b16 %v295, %v289
  %v320 = vpack.c.b16 %v296, %v290
  %v321 = vpack.c.b16 %v297, %v291
  %v322 = vpack.c.b16 %v298, %v292
  %v323 = vpack.c.b16 %v299, %v293
  %v324 = vpack.c.b16 %v300, %v294
  %v325 = vpack.c.b16 %v307, %v301
  %v326 = vpack.c.b16 %v308, %v302
  %v327 = vpack.c.b16 %v309, %v303
  %v328 = vpack.c.b16 %v310, %v304
  %v329 = vpack.c.b16 %v311, %v305
  %v330 = vpack.c.b16 %v312, %v306
  %v331 = vpack.c.b16 %v313, %v313
  %v332 = vpack.c.b16 %v314, %v314
  %v333 = vpack.c.b16 %v315, %v315
  %v334 = vpack.c.b16 %v316, %v316
  %v335 = vpack.c.b16 %v317, %v317
  %v336 = vpack.c.b16 %v318, %v318
  %vm349 = vcmask 293888
  %v351 = vsel %vm349, %v252, 0
  %v354 = vsel %vm60, %v331, 0
  %v357 = vsel %vm60, %v332, 0
  %v360 = vsel %vm60, %v333, 0
  %v363 = vsel %vm60, %v334, 0
  %v366 = vsel %vm60, %v335, 0
  %v369 = vsel %vm60, %v336, 0
  %371 = vmatprep.subr.bf16.mxu0 %v320
  %372 = vmatpush1.bf16.msra.mxu0 %v319
  %373 = vmatprep.subr.bf16.mxu0 %v326
  %374 = vmatpush1.bf16.msra.mxu0 %v325
  %375 = vmatprep.subr.bf16.mxu0 %v357
  %376 = vmatpush1.bf16.msra.mxu0 %v354
  %377 = vmatprep.subr.bf16.mxu0 0
  %378 = vmatpush1.bf16.msra.mxu0 0
  %379 = vmatprep.subr.bf16.mxu0 0
  %380 = vmatpush1.bf16.msra.mxu0 0
  %381 = vmatprep.subr.bf16.mxu0 0
  %382 = vmatpush1.bf16.msra.mxu0 0
  %383 = vmatprep.subr.bf16.mxu0 0
  %384 = vmatpush1.bf16.msra.mxu0 0
  %385 = vmatprep.subr.bf16.mxu0 0
  %386 = vmatpush1.bf16.msra.mxu0 0
  %387 = vmatprep.subr.bf16.mxu0 0
  %388 = vmatpush1.bf16.msra.mxu0 0
  %389 = vmatprep.subr.bf16.mxu0 0
  %390 = vmatpush1.bf16.msra.mxu0 0
  %391 = vmatprep.subr.bf16.mxu0 0
  %392 = vmatpush1.bf16.msra.mxu0 0
  %393 = vmatprep.subr.bf16.mxu0 0
  %394 = vmatpush1.bf16.msra.mxu0 0
  %395 = vmatprep.subr.bf16.mxu0 0
  %396 = vmatpush1.bf16.msra.mxu0 0
  %397 = vmatprep.subr.bf16.mxu0 0
  %398 = vmatpush1.bf16.msra.mxu0 0
  %399 = vmatprep.subr.bf16.mxu0 0
  %400 = vmatpush1.bf16.msra.mxu0 0
  %401 = vmatprep.subr.bf16.mxu0 0
  %402 = vmatpush1.bf16.msra.mxu0 0
  %403 = vmatprep.mubr.bf16.mxu0 0
  %404 = vmatmul.mubr.bf16.gmra.mrb[0].mxu0 %v351
  %v405 = vpop.f32.mrb[0].mxu0
  %v406 = vadd.f32 %v272, %v405
  %v407 = vpop.f32.mrb[0].mxu0
  %v408 = vadd.f32 %v272, %v407
  %v409 = vpop.f32.mrb[0].mxu0
  %v410 = vpop.f32.mrb[0].mxu0
  %411 = vdwg.mxu0
  %412 = vmatprep.subr.bf16.mxu0 %v322
  %413 = vmatpush1.bf16.msra.mxu0 %v321
  %414 = vmatprep.subr.bf16.mxu0 %v328
  %415 = vmatpush1.bf16.msra.mxu0 %v327
  %416 = vmatprep.subr.bf16.mxu0 %v363
  %417 = vmatpush1.bf16.msra.mxu0 %v360
  %418 = vmatprep.subr.bf16.mxu0 0
  %419 = vmatpush1.bf16.msra.mxu0 0
  %420 = vmatprep.subr.bf16.mxu0 0
  %421 = vmatpush1.bf16.msra.mxu0 0
  %422 = vmatprep.subr.bf16.mxu0 0
  %423 = vmatpush1.bf16.msra.mxu0 0
  %424 = vmatprep.subr.bf16.mxu0 0
  %425 = vmatpush1.bf16.msra.mxu0 0
  %426 = vmatprep.subr.bf16.mxu0 0
  %427 = vmatpush1.bf16.msra.mxu0 0
  %428 = vmatprep.subr.bf16.mxu0 0
  %429 = vmatpush1.bf16.msra.mxu0 0
  %430 = vmatprep.subr.bf16.mxu0 0
  %431 = vmatpush1.bf16.msra.mxu0 0
  %432 = vmatprep.subr.bf16.mxu0 0
  %433 = vmatpush1.bf16.msra.mxu0 0
  %434 = vmatprep.subr.bf16.mxu0 0
  %435 = vmatpush1.bf16.msra.mxu0 0
  %436 = vmatprep.subr.bf16.mxu0 0
  %437 = vmatpush1.bf16.msra.mxu0 0
  %438 = vmatprep.subr.bf16.mxu0 0
  %439 = vmatpush1.bf16.msra.mxu0 0
  %440 = vmatprep.subr.bf16.mxu0 0
  %441 = vmatpush1.bf16.msra.mxu0 0
  %442 = vmatprep.subr.bf16.mxu0 0
  %443 = vmatpush1.bf16.msra.mxu0 0
  %444 = vmatprep.mubr.bf16.mxu0 0
  %445 = vmatmul.mubr.bf16.gmra.mrb[0].mxu0 %v351
  %v446 = vpop.f32.mrb[0].mxu0
  %v447 = vadd.f32 %v272, %v446
  %v448 = vpop.f32.mrb[0].mxu0
  %v449 = vadd.f32 %v272, %v448
  %v450 = vpop.f32.mrb[0].mxu0
  %v451 = vpop.f32.mrb[0].mxu0
  %452 = vdwg.mxu0
  %453 = vmatprep.subr.bf16.mxu0 %v324
  %454 = vmatpush1.bf16.msra.mxu0 %v323
  %455 = vmatprep.subr.bf16.mxu0 %v330
  %456 = vmatpush1.bf16.msra.mxu0 %v329
  %457 = vmatprep.subr.bf16.mxu0 %v369
  %458 = vmatpush1.bf16.msra.mxu0 %v366
  %459 = vmatprep.subr.bf16.mxu0 0
  %460 = vmatpush1.bf16.msra.mxu0 0
  %461 = vmatprep.subr.bf16.mxu0 0
  %462 = vmatpush1.bf16.msra.mxu0 0
  %463 = vmatprep.subr.bf16.mxu0 0
  %464 = vmatpush1.bf16.msra.mxu0 0
  %465 = vmatprep.subr.bf16.mxu0 0
  %466 = vmatpush1.bf16.msra.mxu0 0
  %467 = vmatprep.subr.bf16.mxu0 0
  %468 = vmatpush1.bf16.msra.mxu0 0
  %469 = vmatprep.subr.bf16.mxu0 0
  %470 = vmatpush1.bf16.msra.mxu0 0
  %471 = vmatprep.subr.bf16.mxu0 0
  %472 = vmatpush1.bf16.msra.mxu0 0
  %473 = vmatprep.subr.bf16.mxu0 0
  %474 = vmatpush1.bf16.msra.mxu0 0
  %475 = vmatprep.subr.bf16.mxu0 0
  %476 = vmatpush1.bf16.msra.mxu0 0
  %477 = vmatprep.subr.bf16.mxu0 0
  %478 = vmatpush1.bf16.msra.mxu0 0
  %479 = vmatprep.subr.bf16.mxu0 0
  %480 = vmatpush1.bf16.msra.mxu0 0
  %481 = vmatprep.subr.bf16.mxu0 0
  %482 = vmatpush1.bf16.msra.mxu0 0
  %483 = vmatprep.subr.bf16.mxu0 0
  %484 = vmatpush1.bf16.msra.mxu0 0
  %485 = vmatprep.mubr.bf16.mxu0 0
  %486 = vmatmul.mubr.bf16.gmra.mrb[0].mxu0 %v351
  %v487 = vpop.f32.mrb[0].mxu0
  %v488 = vadd.f32 %v272, %v487
  %v489 = vpop.f32.mrb[0].mxu0
  %v490 = vadd.f32 %v272, %v489
  %v491 = vpop.f32.mrb[0].mxu0
  %v492 = vpop.f32.mrb[0].mxu0
  %493 = vdwg.mxu0
  %v494 = vmax.f32 %v406, 0.0
  %v495 = vmax.f32 %v408, 0.0
  %v496 = vmax.f32 %v447, 0.0
  %v497 = vmax.f32 %v449, 0.0
  %v498 = vmax.f32 %v488, 0.0
  %v499 = vmax.f32 %v490, 0.0
  %v500 = vld [vmem:[%s1] sm:$0x3f]
  %v502 = vlaneseq
  %v503 = vshrl.u32 %v502, 7
  %v504 = vsub.s32 0, %v503
  %v505 = vrot.slane %v500, %v504
  %v506 = vlaneseq
  %v507 = vshrl.u32 %v506, 7
  %v508 = vsub.s32 1, %v507
  %v509 = vrot.slane %v500, %v508
  %v510 = vlaneseq
  %v511 = vshrl.u32 %v510, 7
  %v512 = vsub.s32 2, %v511
  %v513 = vrot.slane %v500, %v512
  %v514 = vlaneseq
  %v515 = vshrl.u32 %v514, 7
  %v516 = vsub.s32 3, %v515
  %v517 = vrot.slane %v500, %v516
  %v518 = vlaneseq
  %v519 = vshrl.u32 %v518, 7
  %v520 = vsub.s32 4, %v519
  %v521 = vrot.slane %v500, %v520
  %v522 = vlaneseq
  %v523 = vshrl.u32 %v522, 7
  %v524 = vsub.s32 5, %v523
  %v525 = vrot.slane %v500, %v524
  %v532 = vmul.f32 %v494, %v505
  %v533 = vmul.f32 %v495, %v509
  %v534 = vmul.f32 %v496, %v513
  %v535 = vmul.f32 %v497, %v517
  %v536 = vmul.f32 %v498, %v521
  %v537 = vmul.f32 %v499, %v525
  %v538 = vpack.c.bf16 %v532, %v532
  %v539 = vpack.c.bf16 %v533, %v533
  %v540 = vpack.c.bf16 %v534, %v534
  %v541 = vpack.c.bf16 %v535, %v535
  %v542 = vpack.c.bf16 %v536, %v536
  %v543 = vpack.c.bf16 %v537, %v537
  %vm544 = vcmask 148480
  %545 = vst.msk [vmem:[#allocation3] sm:$0x3] %vm544, 0
  %vm546 = vcmask 1041816
  %547 = vst.msk [vmem:[#allocation3 + $0xa] sm:$0x3] %vm546, 0
  %v554 = vcombine.low %v538, %v539
  %v555 = vcombine.low %v540, %v541
  %v557 = vunpack.c.l.s4 1983009808
  %v558 = vunpack.c.0.s8 %v557
  %v559 = vlaneseq
  %v560 = vshrl.u32 %v559, 7
  %v561 = vsub.s32 %v558, %v560
  %v562 = vrot.slane %v554, %v561
  %v564 = vunpack.c.l.s4 1983009808
  %v565 = vunpack.c.0.s8 %v564
  %v566 = vlaneseq
  %v567 = vshrl.u32 %v566, 7
  %v568 = vsub.s32 %v565, %v567
  %v569 = vrot.slane %v555, %v568
  %v570 = vcombine.low %v562, %v569
  %v571 = vcombine.low %v542, %v543
  %v573 = vunpack.c.l.s4 1983009808
  %v574 = vunpack.c.0.s8 %v573
  %v575 = vlaneseq
  %v576 = vshrl.u32 %v575, 7
  %v577 = vsub.s32 %v574, %v576
  %v578 = vrot.slane %v571, %v577
  %579 = vrot.lane.b32.xlu0 %v570, 19
  %v580 = vpop.permute.xlu0 %579
  %581 = vrot.lane.b32.xlu0 %v578, 19
  %v582 = vpop.permute.xlu0 %581
  %v583 = vrot.slane %v580, 6
  %v584 = vrot.slane %v582, 6
  %vm585 = vcmask 154624
  %v586 = vsel %vm585, %v583, %v580
  %vm587 = vcmask 1041408
  %v588 = vsel %vm587, %v583, %v584
  %v589 = vsel %vm585, %v588, %v582
  %vm592 = vcmask 1041560
  %vm593 = vmor %vm101, %vm592
  %vm594 = vcmask 1045508
  %vm595 = vmor %vm594, %vm593
  %vm596 = vcmask 1047558
  %vm597 = vmor %vm596, %vm595
  %598 = vst.msk [vmem:[#allocation3] sm:$0xff] %vm597, %v586
  %vm599 = vcmask 412674
  %vm600 = vmor %vm599, %vm60
  %601 = vst.msk [vmem:[#allocation3 + $0x8] sm:$0xf] %vm600, %v589
  %v602 = vld [vmem:[#allocation3] sm:$0xff]
  %v603 = vld [vmem:[#allocation3 + $0x8] sm:$0xf]
  %v606 = vcombine.high %v602, %v602
  %v608 = vunpack.c.l.s4 1983009808
  %v609 = vunpack.c.0.s8 %v608
  %v610 = vlaneseq
  %v611 = vshrl.u32 %v610, 7
  %v612 = vsub.s32 %v609, %v611
  %v613 = vrot.slane %v602, %v612
  %v615 = vunpack.c.l.s4 1983009808
  %v616 = vunpack.c.0.s8 %v615
  %v617 = vlaneseq
  %v618 = vshrl.u32 %v617, 7
  %v619 = vsub.s32 %v616, %v618
  %v620 = vrot.slane %v606, %v619
  %v622 = vunpack.c.l.s4 1983009808
  %v623 = vunpack.c.0.s8 %v622
  %v624 = vlaneseq
  %v625 = vshrl.u32 %v624, 7
  %v626 = vsub.s32 %v623, %v625
  %v627 = vrot.slane %v603, %v626
  %631 = vst [vmem:[#allocation4] sm:$0x33] %v613
  %632 = vst [vmem:[#allocation4 + $0x8] sm:$0x33] %v620
  %633 = vst.msk [vmem:[#allocation4 + $0x10] sm:$0x33] %vm62, %v627
  %v634 = vld [vmem:[#allocation3] sm:$0xff]
  %v635 = vld [vmem:[#allocation3 + $0x8] sm:$0xf]
  %v638 = vcombine.low %v634, %v634
  %v640 = vunpack.c.l.s4 1983009808
  %v641 = vunpack.c.0.s8 %v640
  %v642 = vlaneseq
  %v643 = vshrl.u32 %v642, 7
  %v644 = vsub.s32 %v641, %v643
  %v645 = vrot.slane %v638, %v644
  %v647 = vunpack.c.l.s4 1983009808
  %v648 = vunpack.c.0.s8 %v647
  %v649 = vlaneseq
  %v650 = vshrl.u32 %v649, 7
  %v651 = vsub.s32 %v648, %v650
  %v652 = vrot.slane %v634, %v651
  %v653 = vcombine.low %v635, %v635
  %v655 = vunpack.c.l.s4 1983009808
  %v656 = vunpack.c.0.s8 %v655
  %v657 = vlaneseq
  %v658 = vshrl.u32 %v657, 7
  %v659 = vsub.s32 %v656, %v658
  %v660 = vrot.slane %v653, %v659
  %661 = vrot.lane.b32.xlu0 %v645, 127
  %v662 = vpop.permute.xlu0 %661
  %663 = vrot.lane.b32.xlu0 %v652, 127
  %v664 = vpop.permute.xlu0 %663
  %665 = vrot.lane.b32.xlu0 %v660, 127
  %v666 = vpop.permute.xlu0 %665
  %v667 = vrot.slane %v662, 4
  %v668 = vrot.slane %v664, 4
  %v669 = vrot.slane %v666, 4
  %v670 = vsel %vm89, %v667, %v668
  %v671 = vsel %vm91, %v662, %v670
  %v672 = vsel %vm89, %v668, %v669
  %v673 = vsel %vm91, %v664, %v672
  %v674 = vsel %vm91, %v666, %v669
  %678 = vst [vmem:[#allocation4] sm:$0xcc] %v671
  %679 = vst [vmem:[#allocation4 + $0x8] sm:$0xcc] %v673
  %680 = vst.msk [vmem:[#allocation4 + $0x10] sm:$0xcc] %vm103, %v674
  %v681 = vld [vmem:[#allocation3] sm:$0xff]
  %v682 = vld [vmem:[#allocation3 + $0x8] sm:$0xf]
  %v685 = vcombine.high %v681, %v681
  %v687 = vunpack.c.l.s4 1983009808
  %v688 = vunpack.c.0.s8 %v687
  %v689 = vlaneseq
  %v690 = vshrl.u32 %v689, 7
  %v691 = vsub.s32 %v688, %v690
  %v692 = vrot.slane %v681, %v691
  %v694 = vunpack.c.l.s4 1983009808
  %v695 = vunpack.c.0.s8 %v694
  %v696 = vlaneseq
  %v697 = vshrl.u32 %v696, 7
  %v698 = vsub.s32 %v695, %v697
  %v699 = vrot.slane %v685, %v698
  %v701 = vunpack.c.l.s4 1983009808
  %v702 = vunpack.c.0.s8 %v701
  %v703 = vlaneseq
  %v704 = vshrl.u32 %v703, 7
  %v705 = vsub.s32 %v702, %v704
  %v706 = vrot.slane %v682, %v705
  %707 = vrot.lane.b32.xlu0 %v692, 126
  %v708 = vpop.permute.xlu0 %707
  %709 = vrot.lane.b32.xlu0 %v699, 126
  %v710 = vpop.permute.xlu0 %709
  %711 = vrot.lane.b32.xlu0 %v706, 126
  %v712 = vpop.permute.xlu0 %711
  %v713 = vrot.slane %v708, 4
  %v714 = vrot.slane %v710, 4
  %v715 = vrot.slane %v712, 4
  %v716 = vsel %vm89, %v713, %v714
  %v717 = vsel %vm115, %v708, %v716
  %v718 = vsel %vm89, %v714, %v715
  %v719 = vsel %vm115, %v710, %v718
  %v720 = vsel %vm115, %v712, %v715
  %724 = vst [vmem:[#allocation4 + $0x18] sm:$0x33] %v717
  %725 = vst [vmem:[#allocation4 + $0x20] sm:$0x33] %v719
  %726 = vst.msk [vmem:[#allocation4 + $0x28] sm:$0x33] %vm62, %v720
  %v727 = vld [vmem:[#allocation3] sm:$0xff]
  %v728 = vld [vmem:[#allocation3 + $0x8] sm:$0xf]
  %v731 = vcombine.low %v727, %v727
  %v733 = vunpack.c.l.s4 1983009808
  %v734 = vunpack.c.0.s8 %v733
  %v735 = vlaneseq
  %v736 = vshrl.u32 %v735, 7
  %v737 = vsub.s32 %v734, %v736
  %v738 = vrot.slane %v731, %v737
  %v740 = vunpack.c.l.s4 1983009808
  %v741 = vunpack.c.0.s8 %v740
  %v742 = vlaneseq
  %v743 = vshrl.u32 %v742, 7
  %v744 = vsub.s32 %v741, %v743
  %v745 = vrot.slane %v727, %v744
  %v746 = vcombine.low %v728, %v728
  %v748 = vunpack.c.l.s4 1983009808
  %v749 = vunpack.c.0.s8 %v748
  %v750 = vlaneseq
  %v751 = vshrl.u32 %v750, 7
  %v752 = vsub.s32 %v749, %v751
  %v753 = vrot.slane %v746, %v752
  %754 = vrot.lane.b32.xlu0 %v738, 110
  %v755 = vpop.permute.xlu0 %754
  %756 = vrot.lane.b32.xlu0 %v745, 110
  %v757 = vpop.permute.xlu0 %756
  %758 = vrot.lane.b32.xlu0 %v753, 110
  %v759 = vpop.permute.xlu0 %758
  %v760 = vrot.slane %v755, 4
  %v761 = vrot.slane %v757, 4
  %v762 = vrot.slane %v759, 4
  %v763 = vsel %vm89, %v760, %v761
  %v764 = vsel %vm136, %v755, %v763
  %v765 = vsel %vm89, %v761, %v762
  %v766 = vsel %vm136, %v757, %v765
  %v767 = vsel %vm136, %v759, %v762
  %771 = vst [vmem:[#allocation4 + $0x18] sm:$0xcc] %v764
  %772 = vst [vmem:[#allocation4 + $0x20] sm:$0xcc] %v766
  %773 = vst.msk [vmem:[#allocation4 + $0x28] sm:$0xcc] %vm103, %v767
  %v774 = vld [vmem:[#allocation3] sm:$0xff]
  %v775 = vld [vmem:[#allocation3 + $0x8] sm:$0xf]
  %v778 = vcombine.high %v774, %v774
  %v780 = vunpack.c.l.s4 1983009808
  %v781 = vunpack.c.0.s8 %v780
  %v782 = vlaneseq
  %v783 = vshrl.u32 %v782, 7
  %v784 = vsub.s32 %v781, %v783
  %v785 = vrot.slane %v774, %v784
  %v787 = vunpack.c.l.s4 1983009808
  %v788 = vunpack.c.0.s8 %v787
  %v789 = vlaneseq
  %v790 = vshrl.u32 %v789, 7
  %v791 = vsub.s32 %v788, %v790
  %v792 = vrot.slane %v778, %v791
  %v794 = vunpack.c.l.s4 1983009808
  %v795 = vunpack.c.0.s8 %v794
  %v796 = vlaneseq
  %v797 = vshrl.u32 %v796, 7
  %v798 = vsub.s32 %v795, %v797
  %v799 = vrot.slane %v775, %v798
  %800 = vrot.lane.b32.xlu0 %v785, 109
  %v801 = vpop.permute.xlu0 %800
  %802 = vrot.lane.b32.xlu0 %v792, 109
  %v803 = vpop.permute.xlu0 %802
  %804 = vrot.lane.b32.xlu0 %v799, 109
  %v805 = vpop.permute.xlu0 %804
  %v806 = vrot.slane %v801, 4
  %v807 = vrot.slane %v803, 4
  %v808 = vrot.slane %v805, 4
  %v809 = vsel %vm89, %v806, %v807
  %v810 = vsel %vm157, %v801, %v809
  %v811 = vsel %vm89, %v807, %v808
  %v812 = vsel %vm157, %v803, %v811
  %v813 = vsel %vm157, %v805, %v808
  %817 = vst [vmem:[#allocation4 + $0x30] sm:$0x33] %v810
  %818 = vst [vmem:[#allocation4 + $0x38] sm:$0x33] %v812
  %819 = vst.msk [vmem:[#allocation4 + $0x40] sm:$0x33] %vm62, %v813
  %v820 = vld [vmem:[#allocation3] sm:$0xff]
  %v821 = vld [vmem:[#allocation3 + $0x8] sm:$0xf]
  %v824 = vcombine.low %v820, %v820
  %v826 = vunpack.c.l.s4 1983009808
  %v827 = vunpack.c.0.s8 %v826
  %v828 = vlaneseq
  %v829 = vshrl.u32 %v828, 7
  %v830 = vsub.s32 %v827, %v829
  %v831 = vrot.slane %v824, %v830
  %v833 = vunpack.c.l.s4 1983009808
  %v834 = vunpack.c.0.s8 %v833
  %v835 = vlaneseq
  %v836 = vshrl.u32 %v835, 7
  %v837 = vsub.s32 %v834, %v836
  %v838 = vrot.slane %v820, %v837
  %v839 = vcombine.low %v821, %v821
  %v841 = vunpack.c.l.s4 1983009808
  %v842 = vunpack.c.0.s8 %v841
  %v843 = vlaneseq
  %v844 = vshrl.u32 %v843, 7
  %v845 = vsub.s32 %v842, %v844
  %v846 = vrot.slane %v839, %v845
  %847 = vrot.lane.b32.xlu0 %v831, 108
  %v848 = vpop.permute.xlu0 %847
  %849 = vrot.lane.b32.xlu0 %v838, 108
  %v850 = vpop.permute.xlu0 %849
  %851 = vrot.lane.b32.xlu0 %v846, 108
  %v852 = vpop.permute.xlu0 %851
  %v853 = vrot.slane %v848, 4
  %v854 = vrot.slane %v850, 4
  %v855 = vrot.slane %v852, 4
  %v856 = vsel %vm89, %v853, %v854
  %v857 = vsel %vm178, %v848, %v856
  %v858 = vsel %vm89, %v854, %v855
  %v859 = vsel %vm178, %v850, %v858
  %v860 = vsel %vm178, %v852, %v855
  %864 = vst [vmem:[#allocation4 + $0x30] sm:$0xcc] %v857
  %865 = vst [vmem:[#allocation4 + $0x38] sm:$0xcc] %v859
  %866 = vst.msk [vmem:[#allocation4 + $0x40] sm:$0xcc] %vm103, %v860
  %v867 = vld [vmem:[#allocation3] sm:$0xff]
  %v868 = vld [vmem:[#allocation3 + $0x8] sm:$0xf]
  %v871 = vcombine.high %v867, %v867
  %v873 = vunpack.c.l.s4 1983009808
  %v874 = vunpack.c.0.s8 %v873
  %v875 = vlaneseq
  %v876 = vshrl.u32 %v875, 7
  %v877 = vsub.s32 %v874, %v876
  %v878 = vrot.slane %v867, %v877
  %v880 = vunpack.c.l.s4 1983009808
  %v881 = vunpack.c.0.s8 %v880
  %v882 = vlaneseq
  %v883 = vshrl.u32 %v882, 7
  %v884 = vsub.s32 %v881, %v883
  %v885 = vrot.slane %v871, %v884
  %v887 = vunpack.c.l.s4 1983009808
  %v888 = vunpack.c.0.s8 %v887
  %v889 = vlaneseq
  %v890 = vshrl.u32 %v889, 7
  %v891 = vsub.s32 %v888, %v890
  %v892 = vrot.slane %v868, %v891
  %893 = vrot.lane.b32.xlu0 %v878, 92
  %v894 = vpop.permute.xlu0 %893
  %895 = vrot.lane.b32.xlu0 %v885, 92
  %v896 = vpop.permute.xlu0 %895
  %897 = vrot.lane.b32.xlu0 %v892, 92
  %v898 = vpop.permute.xlu0 %897
  %v899 = vrot.slane %v894, 4
  %v900 = vrot.slane %v896, 4
  %v901 = vrot.slane %v898, 4
  %v902 = vsel %vm89, %v899, %v900
  %v903 = vsel %vm199, %v894, %v902
  %v904 = vsel %vm89, %v900, %v901
  %v905 = vsel %vm199, %v896, %v904
  %v906 = vsel %vm199, %v898, %v901
  %910 = vst [vmem:[#allocation4 + $0x48] sm:$0x33] %v903
  %911 = vst [vmem:[#allocation4 + $0x50] sm:$0x33] %v905
  %912 = vst.msk [vmem:[#allocation4 + $0x58] sm:$0x33] %vm62, %v906
  %v913 = vld [vmem:[#allocation3] sm:$0xff]
  %v914 = vld [vmem:[#allocation3 + $0x8] sm:$0xf]
  %v917 = vcombine.low %v913, %v913
  %v919 = vunpack.c.l.s4 1983009808
  %v920 = vunpack.c.0.s8 %v919
  %v921 = vlaneseq
  %v922 = vshrl.u32 %v921, 7
  %v923 = vsub.s32 %v920, %v922
  %v924 = vrot.slane %v917, %v923
  %v926 = vunpack.c.l.s4 1983009808
  %v927 = vunpack.c.0.s8 %v926
  %v928 = vlaneseq
  %v929 = vshrl.u32 %v928, 7
  %v930 = vsub.s32 %v927, %v929
  %v931 = vrot.slane %v913, %v930
  %v932 = vcombine.low %v914, %v914
  %v934 = vunpack.c.l.s4 1983009808
  %v935 = vunpack.c.0.s8 %v934
  %v936 = vlaneseq
  %v937 = vshrl.u32 %v936, 7
  %v938 = vsub.s32 %v935, %v937
  %v939 = vrot.slane %v932, %v938
  %940 = vrot.lane.b32.xlu0 %v924, 91
  %v941 = vpop.permute.xlu0 %940
  %942 = vrot.lane.b32.xlu0 %v931, 91
  %v943 = vpop.permute.xlu0 %942
  %944 = vrot.lane.b32.xlu0 %v939, 91
  %v945 = vpop.permute.xlu0 %944
  %v946 = vrot.slane %v941, 4
  %v947 = vrot.slane %v943, 4
  %v948 = vrot.slane %v945, 4
  %v949 = vsel %vm89, %v946, %v947
  %v950 = vsel %vm220, %v941, %v949
  %v951 = vsel %vm89, %v947, %v948
  %v952 = vsel %vm220, %v943, %v951
  %v953 = vsel %vm220, %v945, %v948
  %957 = vst [vmem:[#allocation4 + $0x48] sm:$0xcc] %v950
  %958 = vst [vmem:[#allocation4 + $0x50] sm:$0xcc] %v952
  %959 = vst.msk [vmem:[#allocation4 + $0x58] sm:$0xcc] %vm103, %v953
  %v960 = vld [vmem:[#allocation3] sm:$0xff]
  %v961 = vld [vmem:[#allocation3 + $0x8] sm:$0xf]
  %v964 = vcombine.high %v960, %v960
  %v966 = vunpack.c.l.s4 1983009808
  %v967 = vunpack.c.0.s8 %v966
  %v968 = vlaneseq
  %v969 = vshrl.u32 %v968, 7
  %v970 = vsub.s32 %v967, %v969
  %v971 = vrot.slane %v960, %v970
  %v973 = vunpack.c.l.s4 1983009808
  %v974 = vunpack.c.0.s8 %v973
  %v975 = vlaneseq
  %v976 = vshrl.u32 %v975, 7
  %v977 = vsub.s32 %v974, %v976
  %v978 = vrot.slane %v964, %v977
  %v980 = vunpack.c.l.s4 1983009808
  %v981 = vunpack.c.0.s8 %v980
  %v982 = vlaneseq
  %v983 = vshrl.u32 %v982, 7
  %v984 = vsub.s32 %v981, %v983
  %v985 = vrot.slane %v961, %v984
  %986 = vrot.lane.b32.xlu0 %v971, 90
  %v987 = vpop.permute.xlu0 %986
  %988 = vrot.lane.b32.xlu0 %v978, 90
  %v989 = vpop.permute.xlu0 %988
  %990 = vrot.lane.b32.xlu0 %v985, 90
  %v991 = vpop.permute.xlu0 %990
  %v992 = vrot.slane %v987, 4
  %v993 = vrot.slane %v989, 4
  %v994 = vrot.slane %v991, 4
  %v995 = vsel %vm89, %v992, %v993
  %v996 = vsel %vm241, %v987, %v995
  %v997 = vsel %vm89, %v993, %v994
  %v998 = vsel %vm241, %v989, %v997
  %v999 = vsel %vm241, %v991, %v994
  %1003 = vst [vmem:[#allocation4 + $0x60] sm:$0x33] %v996
  %1004 = vst [vmem:[#allocation4 + $0x68] sm:$0x33] %v998
  %1005 = vst.msk [vmem:[#allocation4 + $0x70] sm:$0x33] %vm62, %v999
  %v1006 = vld [vmem:[%s0] sm:$0xff]
  %v1007 = vld [vmem:[%s0 + $0x8] sm:$0xf]
  %v1010 = vcombine.low %v1006, %v1006
  %v1012 = vunpack.c.l.s4 1983009808
  %v1013 = vunpack.c.0.s8 %v1012
  %v1014 = vlaneseq
  %v1015 = vshrl.u32 %v1014, 7
  %v1016 = vsub.s32 %v1013, %v1015
  %v1017 = vrot.slane %v1010, %v1016
  %v1019 = vunpack.c.l.s4 1983009808
  %v1020 = vunpack.c.0.s8 %v1019
  %v1021 = vlaneseq
  %v1022 = vshrl.u32 %v1021, 7
  %v1023 = vsub.s32 %v1020, %v1022
  %v1024 = vrot.slane %v1006, %v1023
  %v1025 = vcombine.low %v1007, %v1007
  %v1027 = vunpack.c.l.s4 1983009808
  %v1028 = vunpack.c.0.s8 %v1027
  %v1029 = vlaneseq
  %v1030 = vshrl.u32 %v1029, 7
  %v1031 = vsub.s32 %v1028, %v1030
  %v1032 = vrot.slane %v1025, %v1031
  %1033 = vrot.lane.b32.xlu0 %v1017, 109
  %v1034 = vpop.permute.xlu0 %1033
  %1035 = vrot.lane.b32.xlu0 %v1024, 109
  %v1036 = vpop.permute.xlu0 %1035
  %1037 = vrot.lane.b32.xlu0 %v1032, 109
  %v1038 = vpop.permute.xlu0 %1037
  %v1039 = vrot.slane %v1034, 4
  %v1040 = vrot.slane %v1036, 4
  %v1041 = vrot.slane %v1038, 4
  %v1042 = vsel %vm89, %v1039, %v1040
  %v1043 = vsel %vm157, %v1034, %v1042
  %v1044 = vsel %vm89, %v1040, %v1041
  %v1045 = vsel %vm157, %v1036, %v1044
  %v1046 = vsel %vm157, %v1038, %v1041
  %1050 = vst [vmem:[#allocation4 + $0x60] sm:$0xcc] %v1043
  %1051 = vst [vmem:[#allocation4 + $0x68] sm:$0xcc] %v1045
  %1052 = vst.msk [vmem:[#allocation4 + $0x70] sm:$0xcc] %vm103, %v1046
  %v1053 = vld [vmem:[%s3] sm:$0xf]
  %v1054 = vld [vmem:[#allocation4] sm:$0xff]
  %v1055 = vld [vmem:[#allocation4 + $0x8] sm:$0xff]
  %v1056 = vld [vmem:[#allocation4 + $0x10] sm:$0xff]
  %v1057 = vld [vmem:[#allocation4 + $0x18] sm:$0xff]
  %v1058 = vld [vmem:[#allocation4 + $0x20] sm:$0xff]
  %v1059 = vld [vmem:[#allocation4 + $0x28] sm:$0xff]
  %v1060 = vld [vmem:[#allocation4 + $0x30] sm:$0xff]
  %v1061 = vld [vmem:[#allocation4 + $0x38] sm:$0xff]
  %v1062 = vld [vmem:[#allocation4 + $0x40] sm:$0xff]
  %v1063 = vld [vmem:[#allocation4 + $0x48] sm:$0xff]
  %v1064 = vld [vmem:[#allocation4 + $0x50] sm:$0xff]
  %v1065 = vld [vmem:[#allocation4 + $0x58] sm:$0xff]
  %v1066 = vld [vmem:[#allocation4 + $0x60] sm:$0xff]
  %v1067 = vld [vmem:[#allocation4 + $0x68] sm:$0xff]
  %v1068 = vld [vmem:[#allocation4 + $0x70] sm:$0xff]
  %v1084 = vunpack.c.l.b16 %v1054
  %v1085 = vunpack.c.h.b16 %v1054
  %v1086 = vunpack.c.l.b16 %v1055
  %v1087 = vunpack.c.h.b16 %v1055
  %v1088 = vunpack.c.l.b16 %v1056
  %v1089 = vunpack.c.h.b16 %v1056
  %v1090 = vunpack.c.l.b16 %v1057
  %v1091 = vunpack.c.h.b16 %v1057
  %v1092 = vunpack.c.l.b16 %v1058
  %v1093 = vunpack.c.h.b16 %v1058
  %v1094 = vunpack.c.l.b16 %v1059
  %v1095 = vunpack.c.h.b16 %v1059
  %v1096 = vunpack.c.l.b16 %v1060
  %v1097 = vunpack.c.h.b16 %v1060
  %v1098 = vunpack.c.l.b16 %v1061
  %v1099 = vunpack.c.h.b16 %v1061
  %v1100 = vunpack.c.l.b16 %v1062
  %v1101 = vunpack.c.h.b16 %v1062
  %v1102 = vunpack.c.l.b16 %v1063
  %v1103 = vunpack.c.h.b16 %v1063
  %v1104 = vunpack.c.l.b16 %v1064
  %v1105 = vunpack.c.h.b16 %v1064
  %v1106 = vunpack.c.l.b16 %v1065
  %v1107 = vunpack.c.h.b16 %v1065
  %v1108 = vunpack.c.l.b16 %v1066
  %v1109 = vunpack.c.h.b16 %v1066
  %v1110 = vunpack.c.l.b16 %v1067
  %v1111 = vunpack.c.h.b16 %v1067
  %v1112 = vunpack.c.l.b16 %v1068
  %v1113 = vunpack.c.h.b16 %v1068
  %v1114 = vpack.c.b16 %v1090, %v1084
  %v1115 = vpack.c.b16 %v1091, %v1085
  %v1116 = vpack.c.b16 %v1092, %v1086
  %v1117 = vpack.c.b16 %v1093, %v1087
  %v1118 = vpack.c.b16 %v1094, %v1088
  %v1119 = vpack.c.b16 %v1095, %v1089
  %v1120 = vpack.c.b16 %v1102, %v1096
  %v1121 = vpack.c.b16 %v1103, %v1097
  %v1122 = vpack.c.b16 %v1104, %v1098
  %v1123 = vpack.c.b16 %v1105, %v1099
  %v1124 = vpack.c.b16 %v1106, %v1100
  %v1125 = vpack.c.b16 %v1107, %v1101
  %v1126 = vpack.c.b16 %v1108, %v1108
  %v1127 = vpack.c.b16 %v1109, %v1109
  %v1128 = vpack.c.b16 %v1110, %v1110
  %v1129 = vpack.c.b16 %v1111, %v1111
  %v1130 = vpack.c.b16 %v1112, %v1112
  %v1131 = vpack.c.b16 %v1113, %v1113
  %vm1144 = vcmask 326656
  %v1146 = vsel %vm1144, %v1053, 0
  %vm1148 = vcmask 1043456
  %v1150 = vsel %vm1148, %v1126, 0
  %v1153 = vsel %vm1148, %v1127, 0
  %v1156 = vsel %vm1148, %v1128, 0
  %v1159 = vsel %vm1148, %v1129, 0
  %v1162 = vsel %vm1148, %v1130, 0
  %v1165 = vsel %vm1148, %v1131, 0
  %1167 = vmatprep.subr.bf16.mxu0 %v1115
  %1168 = vmatpush1.bf16.msra.mxu0 %v1114
  %1169 = vmatprep.subr.bf16.mxu0 %v1121
  %1170 = vmatpush1.bf16.msra.mxu0 %v1120
  %1171 = vmatprep.subr.bf16.mxu0 %v1153
  %1172 = vmatpush1.bf16.msra.mxu0 %v1150
  %1173 = vmatprep.subr.bf16.mxu0 0
  %1174 = vmatpush1.bf16.msra.mxu0 0
  %1175 = vmatprep.subr.bf16.mxu0 0
  %1176 = vmatpush1.bf16.msra.mxu0 0
  %1177 = vmatprep.subr.bf16.mxu0 0
  %1178 = vmatpush1.bf16.msra.mxu0 0
  %1179 = vmatprep.subr.bf16.mxu0 0
  %1180 = vmatpush1.bf16.msra.mxu0 0
  %1181 = vmatprep.subr.bf16.mxu0 0
  %1182 = vmatpush1.bf16.msra.mxu0 0
  %1183 = vmatprep.subr.bf16.mxu0 0
  %1184 = vmatpush1.bf16.msra.mxu0 0
  %1185 = vmatprep.subr.bf16.mxu0 0
  %1186 = vmatpush1.bf16.msra.mxu0 0
  %1187 = vmatprep.subr.bf16.mxu0 0
  %1188 = vmatpush1.bf16.msra.mxu0 0
  %1189 = vmatprep.subr.bf16.mxu0 0
  %1190 = vmatpush1.bf16.msra.mxu0 0
  %1191 = vmatprep.subr.bf16.mxu0 0
  %1192 = vmatpush1.bf16.msra.mxu0 0
  %1193 = vmatprep.subr.bf16.mxu0 0
  %1194 = vmatpush1.bf16.msra.mxu0 0
  %1195 = vmatprep.subr.bf16.mxu0 0
  %1196 = vmatpush1.bf16.msra.mxu0 0
  %1197 = vmatprep.subr.bf16.mxu0 0
  %1198 = vmatpush1.bf16.msra.mxu0 0
  %1199 = vmatprep.mubr.bf16.mxu0 0
  %1200 = vmatmul.mubr.bf16.gmra.mrb[0].mxu0 %v1146
  %v1201 = vpop.f32.mrb[0].mxu0
  %v1202 = vadd.f32 0.0, %v1201
  %v1203 = vpop.f32.mrb[0].mxu0
  %v1204 = vadd.f32 0.0, %v1203
  %v1205 = vpop.f32.mrb[0].mxu0
  %v1206 = vpop.f32.mrb[0].mxu0
  %1207 = vdwg.mxu0
  %1208 = vmatprep.subr.bf16.mxu0 %v1117
  %1209 = vmatpush1.bf16.msra.mxu0 %v1116
  %1210 = vmatprep.subr.bf16.mxu0 %v1123
  %1211 = vmatpush1.bf16.msra.mxu0 %v1122
  %1212 = vmatprep.subr.bf16.mxu0 %v1159
  %1213 = vmatpush1.bf16.msra.mxu0 %v1156
  %1214 = vmatprep.subr.bf16.mxu0 0
  %1215 = vmatpush1.bf16.msra.mxu0 0
  %1216 = vmatprep.subr.bf16.mxu0 0
  %1217 = vmatpush1.bf16.msra.mxu0 0
  %1218 = vmatprep.subr.bf16.mxu0 0
  %1219 = vmatpush1.bf16.msra.mxu0 0
  %1220 = vmatprep.subr.bf16.mxu0 0
  %1221 = vmatpush1.bf16.msra.mxu0 0
  %1222 = vmatprep.subr.bf16.mxu0 0
  %1223 = vmatpush1.bf16.msra.mxu0 0
  %1224 = vmatprep.subr.bf16.mxu0 0
  %1225 = vmatpush1.bf16.msra.mxu0 0
  %1226 = vmatprep.subr.bf16.mxu0 0
  %1227 = vmatpush1.bf16.msra.mxu0 0
  %1228 = vmatprep.subr.bf16.mxu0 0
  %1229 = vmatpush1.bf16.msra.mxu0 0
  %1230 = vmatprep.subr.bf16.mxu0 0
  %1231 = vmatpush1.bf16.msra.mxu0 0
  %1232 = vmatprep.subr.bf16.mxu0 0
  %1233 = vmatpush1.bf16.msra.mxu0 0
  %1234 = vmatprep.subr.bf16.mxu0 0
  %1235 = vmatpush1.bf16.msra.mxu0 0
  %1236 = vmatprep.subr.bf16.mxu0 0
  %1237 = vmatpush1.bf16.msra.mxu0 0
  %1238 = vmatprep.subr.bf16.mxu0 0
  %1239 = vmatpush1.bf16.msra.mxu0 0
  %1240 = vmatprep.mubr.bf16.mxu0 0
  %1241 = vmatmul.mubr.bf16.gmra.mrb[0].mxu0 %v1146
  %v1242 = vpop.f32.mrb[0].mxu0
  %v1243 = vadd.f32 0.0, %v1242
  %v1244 = vpop.f32.mrb[0].mxu0
  %v1245 = vadd.f32 0.0, %v1244
  %v1246 = vpop.f32.mrb[0].mxu0
  %v1247 = vpop.f32.mrb[0].mxu0
  %1248 = vdwg.mxu0
  %1249 = vmatprep.subr.bf16.mxu0 %v1119
  %1250 = vmatpush1.bf16.msra.mxu0 %v1118
  %1251 = vmatprep.subr.bf16.mxu0 %v1125
  %1252 = vmatpush1.bf16.msra.mxu0 %v1124
  %1253 = vmatprep.subr.bf16.mxu0 %v1165
  %1254 = vmatpush1.bf16.msra.mxu0 %v1162
  %1255 = vmatprep.subr.bf16.mxu0 0
  %1256 = vmatpush1.bf16.msra.mxu0 0
  %1257 = vmatprep.subr.bf16.mxu0 0
  %1258 = vmatpush1.bf16.msra.mxu0 0
  %1259 = vmatprep.subr.bf16.mxu0 0
  %1260 = vmatpush1.bf16.msra.mxu0 0
  %1261 = vmatprep.subr.bf16.mxu0 0
  %1262 = vmatpush1.bf16.msra.mxu0 0
  %1263 = vmatprep.subr.bf16.mxu0 0
  %1264 = vmatpush1.bf16.msra.mxu0 0
  %1265 = vmatprep.subr.bf16.mxu0 0
  %1266 = vmatpush1.bf16.msra.mxu0 0
  %1267 = vmatprep.subr.bf16.mxu0 0
  %1268 = vmatpush1.bf16.msra.mxu0 0
  %1269 = vmatprep.subr.bf16.mxu0 0
  %1270 = vmatpush1.bf16.msra.mxu0 0
  %1271 = vmatprep.subr.bf16.mxu0 0
  %1272 = vmatpush1.bf16.msra.mxu0 0
  %1273 = vmatprep.subr.bf16.mxu0 0
  %1274 = vmatpush1.bf16.msra.mxu0 0
  %1275 = vmatprep.subr.bf16.mxu0 0
  %1276 = vmatpush1.bf16.msra.mxu0 0
  %1277 = vmatprep.subr.bf16.mxu0 0
  %1278 = vmatpush1.bf16.msra.mxu0 0
  %1279 = vmatprep.subr.bf16.mxu0 0
  %1280 = vmatpush1.bf16.msra.mxu0 0
  %1281 = vmatprep.mubr.bf16.mxu0 0
  %1282 = vmatmul.mubr.bf16.gmra.mrb[0].mxu0 %v1146
  %v1283 = vpop.f32.mrb[0].mxu0
  %v1284 = vadd.f32 0.0, %v1283
  %v1285 = vpop.f32.mrb[0].mxu0
  %v1286 = vadd.f32 0.0, %v1285
  %v1287 = vpop.f32.mrb[0].mxu0
  %v1288 = vpop.f32.mrb[0].mxu0
  %1289 = vdwg.mxu0
  %v1290 = vld [vmem:[%s6] sm:$0xff]
  %v1291 = vld [vmem:[%s6 + $0x8] sm:$0xff]
  %v1292 = vld [vmem:[%s6 + $0x10] sm:$0xff]
  %v1293 = vld [vmem:[%s6 + $0x18] sm:$0xff]
  %v1294 = vld [vmem:[%s6 + $0x20] sm:$0xff]
  %v1295 = vld [vmem:[%s6 + $0x28] sm:$0xff]
  %v1296 = vld [vmem:[%s6 + $0x30] sm:$0xff]
  %v1297 = vld [vmem:[%s6 + $0x38] sm:$0xff]
  %v1298 = vld [vmem:[%s6 + $0x40] sm:$0xff]
  %v1299 = vld [vmem:[%s6 + $0x48] sm:$0xff]
  %v1300 = vld [vmem:[%s6 + $0x50] sm:$0xff]
  %v1301 = vld [vmem:[%s6 + $0x58] sm:$0xff]
  %v1302 = vld [vmem:[%s6 + $0x60] sm:$0xff]
  %v1303 = vld [vmem:[%s6 + $0x68] sm:$0xff]
  %v1304 = vld [vmem:[%s6 + $0x70] sm:$0xff]
  %v1305 = vld [vmem:[%s6 + $0x78] sm:$0xff]
  %v1306 = vld [vmem:[%s6 + $0x80] sm:$0xff]
  %v1307 = vld [vmem:[%s6 + $0x88] sm:$0xff]
  %v1308 = vld [vmem:[%s6 + $0x90] sm:$0xff]
  %v1309 = vld [vmem:[%s6 + $0x98] sm:$0xff]
  %v1310 = vld [vmem:[%s6 + $0xa0] sm:$0xff]
  %v1311 = vld [vmem:[%s6 + $0xa8] sm:$0xff]
  %v1312 = vld [vmem:[%s6 + $0xb0] sm:$0xff]
  %v1313 = vld [vmem:[%s6 + $0xb8] sm:$0xff]
  %v1314 = vld [vmem:[%s6 + $0xc0] sm:$0xff]
  %v1315 = vld [vmem:[%s6 + $0xc8] sm:$0xff]
  %v1316 = vld [vmem:[%s6 + $0xd0] sm:$0xff]
  %v1317 = vld [vmem:[%s6 + $0xd8] sm:$0xff]
  %v1318 = vld [vmem:[%s6 + $0xe0] sm:$0xff]
  %v1319 = vld [vmem:[%s6 + $0xe8] sm:$0xff]
  %v1320 = vld [vmem:[%s6 + $0xf0] sm:$0xff]
  %v1321 = vld [vmem:[%s6 + $0xf8] sm:$0xff]
  %v1322 = vld [vmem:[%s6 + $0x100] sm:$0xff]
  %v1323 = vld [vmem:[%s6 + $0x108] sm:$0xff]
  %v1324 = vld [vmem:[%s6 + $0x110] sm:$0xff]
  %v1325 = vld [vmem:[%s6 + $0x118] sm:$0xff]
  %vm1326 = vcmask 261120
  %v1328 = vsel %vm1326, %v1243, 0
  %1330 = vmatprep.subr.mxu0 0.0
  %1331 = vmatpush1.msra.mxu0 %v1290
  %1332 = vmatprep.subr.mxu0 0.0
  %1333 = vmatpush1.msra.mxu0 %v1291
  %1334 = vmatprep.subr.mxu0 0.0
  %1335 = vmatpush1.msra.mxu0 %v1292
  %1336 = vmatprep.subr.mxu0 0.0
  %1337 = vmatpush1.msra.mxu0 %v1293
  %1338 = vmatprep.subr.mxu0 0.0
  %1339 = vmatpush1.msra.mxu0 %v1294
  %1340 = vmatprep.subr.mxu0 0.0
  %1341 = vmatpush1.msra.mxu0 %v1295
  %1342 = vmatprep.subr.mxu0 0.0
  %1343 = vmatpush1.msra.mxu0 %v1296
  %1344 = vmatprep.subr.mxu0 0.0
  %1345 = vmatpush1.msra.mxu0 %v1297
  %1346 = vmatprep.subr.mxu0 0.0
  %1347 = vmatpush1.msra.mxu0 %v1298
  %1348 = vmatprep.subr.mxu0 0.0
  %1349 = vmatpush1.msra.mxu0 %v1299
  %1350 = vmatprep.subr.mxu0 0.0
  %1351 = vmatpush1.msra.mxu0 %v1300
  %1352 = vmatprep.subr.mxu0 0.0
  %1353 = vmatpush1.msra.mxu0 %v1301
  %1354 = vmatprep.subr.mxu0 0.0
  %1355 = vmatpush1.msra.mxu0 %v1302
  %1356 = vmatprep.subr.mxu0 0.0
  %1357 = vmatpush1.msra.mxu0 %v1303
  %1358 = vmatprep.subr.mxu0 0.0
  %1359 = vmatpush1.msra.mxu0 %v1304
  %1360 = vmatprep.subr.mxu0 0.0
  %1361 = vmatpush1.msra.mxu0 %v1305
  %1362 = vmatprep.subr.mxu0 0.0
  %1363 = vmatpush1.msra.mxu0 %v1306
  %1364 = vmatprep.subr.mxu0 0.0
  %1365 = vmatpush1.msra.mxu0 %v1307
  %1366 = vmatprep.subr.mxu0 0.0
  %1367 = vmatpush1.msra.mxu0 %v1308
  %1368 = vmatprep.subr.mxu0 0.0
  %1369 = vmatpush1.msra.mxu0 %v1309
  %1370 = vmatprep.subr.mxu0 0.0
  %1371 = vmatpush1.msra.mxu0 %v1310
  %1372 = vmatprep.subr.mxu0 0.0
  %1373 = vmatpush1.msra.mxu0 %v1311
  %1374 = vmatprep.subr.mxu0 0.0
  %1375 = vmatpush1.msra.mxu0 %v1312
  %1376 = vmatprep.subr.mxu0 0.0
  %1377 = vmatpush1.msra.mxu0 %v1313
  %1378 = vmatprep.subr.mxu0 0.0
  %1379 = vmatpush1.msra.mxu0 %v1314
  %1380 = vmatprep.subr.mxu0 0.0
  %1381 = vmatpush1.msra.mxu0 %v1315
  %1382 = vmatprep.subr.mxu0 0.0
  %1383 = vmatpush1.msra.mxu0 %v1316
  %1384 = vmatprep.subr.mxu0 0.0
  %1385 = vmatpush1.msra.mxu0 %v1317
  %1386 = vmatprep.subr.mxu0 0.0
  %1387 = vmatpush1.msra.mxu0 %v1318
  %1388 = vmatprep.subr.mxu0 0.0
  %1389 = vmatpush1.msra.mxu0 %v1319
  %1390 = vmatprep.subr.mxu0 0.0
  %1391 = vmatpush1.msra.mxu0 %v1320
  %1392 = vmatprep.subr.mxu0 0.0
  %1393 = vmatpush1.msra.mxu0 %v1321
  %1394 = vmatprep.mubr.f32.mxu0 %v1204
  %1395 = vmatmul.mubr.f32.gmra.mrb[0].mxu0 %v1202
  %v1396 = vpop.f32.mrb[0].mxu0
  %v1397 = vadd.f32 0.0, %v1396
  %v1398 = vpop.f32.mrb[0].mxu0
  %1399 = vdwg.mxu0
  %1400 = vmatprep.subr.mxu0 0.0
  %1401 = vmatpush1.msra.mxu0 %v1322
  %1402 = vmatprep.subr.mxu0 0.0
  %1403 = vmatpush1.msra.mxu0 %v1323
  %1404 = vmatprep.subr.mxu0 0.0
  %1405 = vmatpush1.msra.mxu0 %v1324
  %1406 = vmatprep.subr.mxu0 0.0
  %1407 = vmatpush1.msra.mxu0 %v1325
  %1408 = vmatprep.subr.mxu0 0.0
  %1409 = vmatpush1.msra.mxu0 0.0
  %1410 = vmatprep.subr.mxu0 0.0
  %1411 = vmatpush1.msra.mxu0 0.0
  %1412 = vmatprep.subr.mxu0 0.0
  %1413 = vmatpush1.msra.mxu0 0.0
  %1414 = vmatprep.subr.mxu0 0.0
  %1415 = vmatpush1.msra.mxu0 0.0
  %1416 = vmatprep.subr.mxu0 0.0
  %1417 = vmatpush1.msra.mxu0 0.0
  %1418 = vmatprep.subr.mxu0 0.0
  %1419 = vmatpush1.msra.mxu0 0.0
  %1420 = vmatprep.subr.mxu0 0.0
  %1421 = vmatpush1.msra.mxu0 0.0
  %1422 = vmatprep.subr.mxu0 0.0
  %1423 = vmatpush1.msra.mxu0 0.0
  %1424 = vmatprep.subr.mxu0 0.0
  %1425 = vmatpush1.msra.mxu0 0.0
  %1426 = vmatprep.subr.mxu0 0.0
  %1427 = vmatpush1.msra.mxu0 0.0
  %1428 = vmatprep.subr.mxu0 0.0
  %1429 = vmatpush1.msra.mxu0 0.0
  %1430 = vmatprep.subr.mxu0 0.0
  %1431 = vmatpush1.msra.mxu0 0.0
  %1432 = vmatprep.subr.mxu0 0.0
  %1433 = vmatpush1.msra.mxu0 0.0
  %1434 = vmatprep.subr.mxu0 0.0
  %1435 = vmatpush1.msra.mxu0 0.0
  %1436 = vmatprep.subr.mxu0 0.0
  %1437 = vmatpush1.msra.mxu0 0.0
  %1438 = vmatprep.subr.mxu0 0.0
  %1439 = vmatpush1.msra.mxu0 0.0
  %1440 = vmatprep.subr.mxu0 0.0
  %1441 = vmatpush1.msra.mxu0 0.0
  %1442 = vmatprep.subr.mxu0 0.0
  %1443 = vmatpush1.msra.mxu0 0.0
  %1444 = vmatprep.subr.mxu0 0.0
  %1445 = vmatpush1.msra.mxu0 0.0
  %1446 = vmatprep.subr.mxu0 0.0
  %1447 = vmatpush1.msra.mxu0 0.0
  %1448 = vmatprep.subr.mxu0 0.0
  %1449 = vmatpush1.msra.mxu0 0.0
  %1450 = vmatprep.subr.mxu0 0.0
  %1451 = vmatpush1.msra.mxu0 0.0
  %1452 = vmatprep.subr.mxu0 0.0
  %1453 = vmatpush1.msra.mxu0 0.0
  %1454 = vmatprep.subr.mxu0 0.0
  %1455 = vmatpush1.msra.mxu0 0.0
  %1456 = vmatprep.subr.mxu0 0.0
  %1457 = vmatpush1.msra.mxu0 0.0
  %1458 = vmatprep.subr.mxu0 0.0
  %1459 = vmatpush1.msra.mxu0 0.0
  %1460 = vmatprep.subr.mxu0 0.0
  %1461 = vmatpush1.msra.mxu0 0.0
  %1462 = vmatprep.subr.mxu0 0.0
  %1463 = vmatpush1.msra.mxu0 0.0
  %1464 = vmatprep.mubr.f32.mxu0 0.0
  %1465 = vmatmul.mubr.f32.gmra.mrb[0].mxu0 %v1328
  %v1466 = vpop.f32.mrb[0].mxu0
  %v1467 = vadd.f32 %v1397, %v1466
  %v1468 = vpop.f32.mrb[0].mxu0
  %1469 = vdwg.mxu0
  %v1471 = vsel %vm1326, %v1286, 0
  %1473 = vmatprep.subr.mxu0 0.0
  %1474 = vmatpush1.msra.mxu0 %v1290
  %1475 = vmatprep.subr.mxu0 0.0
  %1476 = vmatpush1.msra.mxu0 %v1291
  %1477 = vmatprep.subr.mxu0 0.0
  %1478 = vmatpush1.msra.mxu0 %v1292
  %1479 = vmatprep.subr.mxu0 0.0
  %1480 = vmatpush1.msra.mxu0 %v1293
  %1481 = vmatprep.subr.mxu0 0.0
  %1482 = vmatpush1.msra.mxu0 %v1294
  %1483 = vmatprep.subr.mxu0 0.0
  %1484 = vmatpush1.msra.mxu0 %v1295
  %1485 = vmatprep.subr.mxu0 0.0
  %1486 = vmatpush1.msra.mxu0 %v1296
  %1487 = vmatprep.subr.mxu0 0.0
  %1488 = vmatpush1.msra.mxu0 %v1297
  %1489 = vmatprep.subr.mxu0 0.0
  %1490 = vmatpush1.msra.mxu0 %v1298
  %1491 = vmatprep.subr.mxu0 0.0
  %1492 = vmatpush1.msra.mxu0 %v1299
  %1493 = vmatprep.subr.mxu0 0.0
  %1494 = vmatpush1.msra.mxu0 %v1300
  %1495 = vmatprep.subr.mxu0 0.0
  %1496 = vmatpush1.msra.mxu0 %v1301
  %1497 = vmatprep.subr.mxu0 0.0
  %1498 = vmatpush1.msra.mxu0 %v1302
  %1499 = vmatprep.subr.mxu0 0.0
  %1500 = vmatpush1.msra.mxu0 %v1303
  %1501 = vmatprep.subr.mxu0 0.0
  %1502 = vmatpush1.msra.mxu0 %v1304
  %1503 = vmatprep.subr.mxu0 0.0
  %1504 = vmatpush1.msra.mxu0 %v1305
  %1505 = vmatprep.subr.mxu0 0.0
  %1506 = vmatpush1.msra.mxu0 %v1306
  %1507 = vmatprep.subr.mxu0 0.0
  %1508 = vmatpush1.msra.mxu0 %v1307
  %1509 = vmatprep.subr.mxu0 0.0
  %1510 = vmatpush1.msra.mxu0 %v1308
  %1511 = vmatprep.subr.mxu0 0.0
  %1512 = vmatpush1.msra.mxu0 %v1309
  %1513 = vmatprep.subr.mxu0 0.0
  %1514 = vmatpush1.msra.mxu0 %v1310
  %1515 = vmatprep.subr.mxu0 0.0
  %1516 = vmatpush1.msra.mxu0 %v1311
  %1517 = vmatprep.subr.mxu0 0.0
  %1518 = vmatpush1.msra.mxu0 %v1312
  %1519 = vmatprep.subr.mxu0 0.0
  %1520 = vmatpush1.msra.mxu0 %v1313
  %1521 = vmatprep.subr.mxu0 0.0
  %1522 = vmatpush1.msra.mxu0 %v1314
  %1523 = vmatprep.subr.mxu0 0.0
  %1524 = vmatpush1.msra.mxu0 %v1315
  %1525 = vmatprep.subr.mxu0 0.0
  %1526 = vmatpush1.msra.mxu0 %v1316
  %1527 = vmatprep.subr.mxu0 0.0
  %1528 = vmatpush1.msra.mxu0 %v1317
  %1529 = vmatprep.subr.mxu0 0.0
  %1530 = vmatpush1.msra.mxu0 %v1318
  %1531 = vmatprep.subr.mxu0 0.0
  %1532 = vmatpush1.msra.mxu0 %v1319
  %1533 = vmatprep.subr.mxu0 0.0
  %1534 = vmatpush1.msra.mxu0 %v1320
  %1535 = vmatprep.subr.mxu0 0.0
  %1536 = vmatpush1.msra.mxu0 %v1321
  %1537 = vmatprep.mubr.f32.mxu0 %v1284
  %1538 = vmatmul.mubr.f32.gmra.mrb[0].mxu0 %v1245
  %v1539 = vpop.f32.mrb[0].mxu0
  %v1540 = vadd.f32 0.0, %v1539
  %v1541 = vpop.f32.mrb[0].mxu0
  %1542 = vdwg.mxu0
  %1543 = vmatprep.subr.mxu0 0.0
  %1544 = vmatpush1.msra.mxu0 %v1322
  %1545 = vmatprep.subr.mxu0 0.0
  %1546 = vmatpush1.msra.mxu0 %v1323
  %1547 = vmatprep.subr.mxu0 0.0
  %1548 = vmatpush1.msra.mxu0 %v1324
  %1549 = vmatprep.subr.mxu0 0.0
  %1550 = vmatpush1.msra.mxu0 %v1325
  %1551 = vmatprep.subr.mxu0 0.0
  %1552 = vmatpush1.msra.mxu0 0.0
  %1553 = vmatprep.subr.mxu0 0.0
  %1554 = vmatpush1.msra.mxu0 0.0
  %1555 = vmatprep.subr.mxu0 0.0
  %1556 = vmatpush1.msra.mxu0 0.0
  %1557 = vmatprep.subr.mxu0 0.0
  %1558 = vmatpush1.msra.mxu0 0.0
  %1559 = vmatprep.subr.mxu0 0.0
  %1560 = vmatpush1.msra.mxu0 0.0
  %1561 = vmatprep.subr.mxu0 0.0
  %1562 = vmatpush1.msra.mxu0 0.0
  %1563 = vmatprep.subr.mxu0 0.0
  %1564 = vmatpush1.msra.mxu0 0.0
  %1565 = vmatprep.subr.mxu0 0.0
  %1566 = vmatpush1.msra.mxu0 0.0
  %1567 = vmatprep.subr.mxu0 0.0
  %1568 = vmatpush1.msra.mxu0 0.0
  %1569 = vmatprep.subr.mxu0 0.0
  %1570 = vmatpush1.msra.mxu0 0.0
  %1571 = vmatprep.subr.mxu0 0.0
  %1572 = vmatpush1.msra.mxu0 0.0
  %1573 = vmatprep.subr.mxu0 0.0
  %1574 = vmatpush1.msra.mxu0 0.0
  %1575 = vmatprep.subr.mxu0 0.0
  %1576 = vmatpush1.msra.mxu0 0.0
  %1577 = vmatprep.subr.mxu0 0.0
  %1578 = vmatpush1.msra.mxu0 0.0
  %1579 = vmatprep.subr.mxu0 0.0
  %1580 = vmatpush1.msra.mxu0 0.0
  %1581 = vmatprep.subr.mxu0 0.0
  %1582 = vmatpush1.msra.mxu0 0.0
  %1583 = vmatprep.subr.mxu0 0.0
  %1584 = vmatpush1.msra.mxu0 0.0
  %1585 = vmatprep.subr.mxu0 0.0
  %1586 = vmatpush1.msra.mxu0 0.0
  %1587 = vmatprep.subr.mxu0 0.0
  %1588 = vmatpush1.msra.mxu0 0.0
  %1589 = vmatprep.subr.mxu0 0.0
  %1590 = vmatpush1.msra.mxu0 0.0
  %1591 = vmatprep.subr.mxu0 0.0
  %1592 = vmatpush1.msra.mxu0 0.0
  %1593 = vmatprep.subr.mxu0 0.0
  %1594 = vmatpush1.msra.mxu0 0.0
  %1595 = vmatprep.subr.mxu0 0.0
  %1596 = vmatpush1.msra.mxu0 0.0
  %1597 = vmatprep.subr.mxu0 0.0
  %1598 = vmatpush1.msra.mxu0 0.0
  %1599 = vmatprep.subr.mxu0 0.0
  %1600 = vmatpush1.msra.mxu0 0.0
  %1601 = vmatprep.subr.mxu0 0.0
  %1602 = vmatpush1.msra.mxu0 0.0
  %1603 = vmatprep.subr.mxu0 0.0
  %1604 = vmatpush1.msra.mxu0 0.0
  %1605 = vmatprep.subr.mxu0 0.0
  %1606 = vmatpush1.msra.mxu0 0.0
  %1607 = vmatprep.mubr.f32.mxu0 0.0
  %1608 = vmatmul.mubr.f32.gmra.mrb[0].mxu0 %v1471
  %v1609 = vpop.f32.mrb[0].mxu0
  %v1610 = vadd.f32 %v1540, %v1609
  %v1611 = vpop.f32.mrb[0].mxu0
  %1612 = vdwg.mxu0
  %1614 = vrot.lane.b32.xlu0 %v1610, 64
  %v1615 = vpop.permute.xlu0 %1614
  %vm1617 = vcmask 523264
  %v1618 = vsel %vm1617, %v1467, %v1615
  %v1619 = vld [vmem:[%s5] sm:$0xff]
  %1621 = vset.pattern.permute.xlu0 0
  %1622 = vperm.xlu0 %1621, %v1619
  %v1623 = vpop.permute.xlu0 %1622
  %v1625 = vadd.f32 %v1618, %v1623
  %1626 = vst [vmem:[%s7] sm:$0xff] %v1625
  // Predicated region
  $region30: #{dis_block_forward.1} parent=0 // pred_check
    _
  $region31: #{dis_block_forward.1} parent=0 // pred_check_branch
    %1628 = sbr.rel (0) target = $region33
  $region32: #{dis_block_forward.1} parent=0 // pred_region
    _
  $region33: #{dis_block_forward.1} parent=0 // pred_fallthru
    _
  // Predicated region
  $region34: #{dis_block_forward.1} parent=0 // pred_check
    _
  $region35: #{dis_block_forward.1} parent=0 // pred_check_branch
    %1630 = sbr.rel (0) target = $region37
  $region36: #{dis_block_forward.1} parent=0 // pred_region
    _
  $region37: #{dis_block_forward.1} parent=0 // pred_fallthru
    _

</llo_original>
